<compile_context>
chip_gen: v7x
topology: tpu7x:2x2x1
jax: 0.10.0
libtpu: 0.0.40
codegen_flags: <defaults>
</compile_context>

<pallas_src>
import jax
import jax.numpy as jnp
from jax import lax
from jax.experimental import pallas as pl
from jax.experimental.pallas import tpu as pltpu


# ----------------------------- Pallas kernel --------------------------------
def _make_lstm_tagger_kernel(T, B, H):
    G = 4 * H          # gates per direction
    H2 = 2 * H
    f32 = jnp.float32

    def kernel(xx_ref,                      # (T*B, 2E)  row s = [x(s) | x(T-1-s)]
               w0_ref, b0_ref,              # (2E, 8H), (1, 8H)  layer-0, gate-interleaved
               whh0_ref,                    # (2H, 8H)           block-diag, gate-interleaved
               w1_ref, b1_ref,              # (2H, 8H), (1, 8H)  layer-1 fwd|bwd packed
               whh1_ref,                    # (H, 4H)            layer-1 fwd recurrent
               wlin_ref, blin_ref,          # (2H, O), (1, O)
               out_ref,                     # (B, O)
               seq0_ref):                   # scratch (T*B, 2H)  layer-0 outputs
        # ---- hoisted layer-0 input projection, both directions, bias folded ----
        gin0 = (jnp.dot(xx_ref[...], w0_ref[...], preferred_element_type=f32)
                + b0_ref[...])                                    # (T*B, 8H)
        whh0 = whh0_ref[...]                                      # hoisted weight load

        # ---- fused bidirectional layer-0 recurrence ----
        # Gate layout [i_f i_b | f_f f_b | g_f g_b | o_f o_b] lets both
        # directions' cell updates run on combined (B, 2H) slabs with zero
        # per-step concatenates; only h @ W_hh stays on the serial MXU path.
        h = jnp.zeros((B, H2), f32)                               # [h_f | h_b]
        c = jnp.zeros((B, H2), f32)                               # [c_f | c_b]
        for s in range(T):
            r = T - 1 - s
            gates = (gin0[s * B:(s + 1) * B, :]
                     + jnp.dot(h, whh0, preferred_element_type=f32))   # (B, 8H)
            sig = jax.nn.sigmoid(gates)                           # i | f | . | o
            g_act = jnp.tanh(gates[:, 2 * H2:3 * H2])             # g slab (B, 2H)
            c = sig[:, H2:2 * H2] * c + sig[:, :H2] * g_act
            h = sig[:, 3 * H2:] * jnp.tanh(c)
            seq0_ref[s * B:(s + 1) * B, :H] = h[:, :H]            # fwd out @ t = s
            seq0_ref[r * B:(r + 1) * B, H:] = h[:, H:]            # bwd out @ t = r

        # ---- hoisted layer-1 input projection (single (T*B,2H)@(2H,8H) matmul) ----
        gin1 = (jnp.dot(seq0_ref[...], w1_ref[...], preferred_element_type=f32)
                + b1_ref[...])                                    # (T*B, 8H)
        whh1 = whh1_ref[...]

        # ---- layer-1 forward recurrence: only the final hidden state is needed ----
        h1 = jnp.zeros((B, H), f32)
        c1 = jnp.zeros((B, H), f32)
        for t in range(T):
            gates = (gin1[t * B:(t + 1) * B, :G]
                     + jnp.dot(h1, whh1, preferred_element_type=f32))   # (B, 4H)
            sig = jax.nn.sigmoid(gates)
            g_act = jnp.tanh(gates[:, 2 * H:3 * H])
            c1 = sig[:, H:2 * H] * c1 + sig[:, 0:H] * g_act
            h1 = sig[:, 3 * H:4 * H] * jnp.tanh(c1)

        # ---- layer-1 backward direction ----
        # out[:, -1, H:] of the bidirectional LSTM is the backward hidden state
        # after its FIRST step (zero initial state), i.e. a single cell step on
        # timestep T-1.  The h @ W_hh term vanishes (h0 == 0), so it reduces to
        # pure gate math on the already-hoisted gin1.  Valid ONLY because the
        # initial states are zero and only the last timestep is consumed.
        gb = gin1[(T - 1) * B:T * B, G:]                          # (B, 4H)
        sigb = jax.nn.sigmoid(gb)
        c1b = sigb[:, 0:H] * jnp.tanh(gb[:, 2 * H:3 * H])
        h1b = sigb[:, 3 * H:4 * H] * jnp.tanh(c1b)

        # ---- final Linear on [h1_fwd_last | h1_bwd_at_T-1], split -> no concat ----
        out_ref[...] = (jnp.dot(h1, wlin_ref[:H, :], preferred_element_type=f32)
                        + jnp.dot(h1b, wlin_ref[H:, :], preferred_element_type=f32)
                        + blin_ref[...])

    return kernel


# ------------------------------- wrapper -------------------------------------
def lstm_tagger_forward(features, params, embedding_specs, hidden_dim, output_dim):
    H, O = hidden_dim, output_dim
    H2, G2 = 2 * H, 8 * H
    p = params
    f32 = jnp.float32

    # Embedding lookup (glue, plain JAX gather — matches the module's per-spec
    # nn.Embedding writes into a contiguous (B, T, E) buffer).
    pieces, idx = [], 0
    for i, (m, n, e) in enumerate(embedding_specs):
        pieces.append(jnp.take(p[f"emb{i}"], features[:, idx:idx + m], axis=0))
        idx += m
    x = jnp.concatenate(pieces, axis=1).astype(f32)               # (B, T, E)
    B, T, E = x.shape
    xs = jnp.transpose(x, (1, 0, 2))                              # (T, B, E) time-major
    # Row block s holds [x(s) | x(T-1-s)] so fwd and bwd input gates of the
    # fused layer-0 recurrence come out of ONE hoisted matmul, contiguously.
    xx = jnp.concatenate([xs, xs[::-1]], axis=-1).reshape(T * B, 2 * E)

    def tr(w):  # (gates, in) -> (in, gates)
        return jnp.transpose(w).astype(f32)

    def gate_pack(wf_t, wb_t):
        """Block-diagonal stack of (in_f,4H) + (in_b,4H) with columns re-grouped
        per gate type across directions: [i_f i_b | f_f f_b | g_f g_b | o_f o_b]."""
        in_f, in_b = wf_t.shape[0], wb_t.shape[0]
        zf = jnp.zeros((in_b, H), f32)
        zb = jnp.zeros((in_f, H), f32)
        cols = []
        for q in range(4):
            cols.append(jnp.concatenate([wf_t[:, q * H:(q + 1) * H], zf], axis=0))
            cols.append(jnp.concatenate([zb, wb_t[:, q * H:(q + 1) * H]], axis=0))
        return jnp.concatenate(cols, axis=1)                      # (in_f+in_b, 8H)

    def gate_bias(bf, bb):
        parts = []
        for q in range(4):
            parts.append(bf[q * H:(q + 1) * H])
            parts.append(bb[q * H:(q + 1) * H])
        return jnp.concatenate(parts).reshape(1, G2).astype(f32)

    # ---- packed weight slabs ----
    b0f = (p["b_ih_l0"] + p["b_hh_l0"]).astype(f32)
    b0b = (p["b_ih_l0_rev"] + p["b_hh_l0_rev"]).astype(f32)
    w0_pack = gate_pack(tr(p["w_ih_l0"]), tr(p["w_ih_l0_rev"]))           # (2E, 8H)
    b0_pack = gate_bias(b0f, b0b)                                         # (1, 8H)
    whh0_pack = gate_pack(tr(p["w_hh_l0"]), tr(p["w_hh_l0_rev"]))         # (2H, 8H)

    w1_pack = jnp.concatenate([tr(p["w_ih_l1"]), tr(p["w_ih_l1_rev"])], axis=1)   # (2H, 8H)
    b1_pack = jnp.concatenate([(p["b_ih_l1"] + p["b_hh_l1"]),
                               (p["b_ih_l1_rev"] + p["b_hh_l1_rev"])]
                              ).reshape(1, G2).astype(f32)
    whh1 = tr(p["w_hh_l1"])                                               # (H, 4H)
    wlin = tr(p["lin_w"])                                                 # (2H, O)
    blin = p["lin_b"].reshape(1, O).astype(f32)

    ins = [xx, w0_pack, b0_pack, whh0_pack, w1_pack, b1_pack, whh1, wlin, blin]

    flops = (2 * T * B * (2 * E) * G2      # layer-0 hoisted input projection
             + T * 2 * B * H2 * G2         # layer-0 fused recurrence
             + 2 * T * B * H2 * G2         # layer-1 hoisted input projection
             + T * 2 * B * H * (4 * H)     # layer-1 forward recurrence
             + 2 * B * H2 * O)             # final linear
    transcendentals = (T * B * (G2 + 2 * H2)        # layer-0 sigmoid + tanh(g) + tanh(c)
                       + T * B * (4 * H + 2 * H)    # layer-1 fwd
                       + B * (4 * H + 2 * H))       # layer-1 bwd single step
    bytes_accessed = int(sum(a.size for a in ins) * 4 + B * O * 4)

    vmem = pl.BlockSpec(memory_space=pltpu.MemorySpace.VMEM)
    return pl.pallas_call(
        _make_lstm_tagger_kernel(T, B, H),
        out_shape=jax.ShapeDtypeStruct((B, O), jnp.float32),
        in_specs=[vmem] * len(ins),
        out_specs=vmem,
        scratch_shapes=[pltpu.VMEM((T * B, H2), jnp.float32)],   # merged layer-0 outputs
        cost_estimate=pl.CostEstimate(flops=flops,
                                      transcendentals=transcendentals,
                                      bytes_accessed=bytes_accessed),
    )(*ins)


# --------------------------- pure-JAX reference -------------------------------
def reference_forward(features, params, embedding_specs, hidden_dim, output_dim):
    H = hidden_dim
    pieces, idx = [], 0
    for i, (m, n, e) in enumerate(embedding_specs):
        pieces.append(jnp.take(params[f"emb{i}"], features[:, idx:idx + m], axis=0))
        idx += m
    x = jnp.concatenate(pieces, axis=1).astype(jnp.float32)       # (B, T, E)
    xs = jnp.transpose(x, (1, 0, 2))                              # (T, B, E)
    B = xs.shape[1]

    def lstm_dir(seq, w_ih, w_hh, b_ih, b_hh, reverse):
        def step(carry, x_t):
            h, c = carry
            gates = x_t @ w_ih.T + h @ w_hh.T + b_ih + b_hh
            i = jax.nn.sigmoid(gates[:, :H])
            f = jax.nn.sigmoid(gates[:, H:2 * H])
            g = jnp.tanh(gates[:, 2 * H:3 * H])
            o = jax.nn.sigmoid(gates[:, 3 * H:])
            c = f * c + i * g
            h = o * jnp.tanh(c)
            return (h, c), h
        init = (jnp.zeros((B, H), jnp.float32), jnp.zeros((B, H), jnp.float32))
        _, hs = lax.scan(step, init, seq, reverse=reverse)
        return hs                                                 # (T, B, H)

    p = params
    f0 = lstm_dir(xs, p["w_ih_l0"], p["w_hh_l0"], p["b_ih_l0"], p["b_hh_l0"], False)
    b0 = lstm_dir(xs, p["w_ih_l0_rev"], p["w_hh_l0_rev"],
                  p["b_ih_l0_rev"], p["b_hh_l0_rev"], True)
    out0 = jnp.concatenate([f0, b0], axis=-1)                     # (T, B, 2H)
    f1 = lstm_dir(out0, p["w_ih_l1"], p["w_hh_l1"], p["b_ih_l1"], p["b_hh_l1"], False)
    b1 = lstm_dir(out0, p["w_ih_l1_rev"], p["w_hh_l1_rev"],
                  p["b_ih_l1_rev"], p["b_hh_l1_rev"], True)
    last = jnp.concatenate([f1[-1], b1[-1]], axis=-1)             # (B, 2H)
    return last @ p["lin_w"].T + p["lin_b"]


# ------------------------------ param init ------------------------------------
def init_params(key, embedding_specs, hidden_dim, output_dim):
    H, O = hidden_dim, output_dim
    e = embedding_specs[-1][2]
    keys = iter(jax.random.split(key, 64))
    s = float(1.0 / (H ** 0.5))

    def u(shape):
        return jax.random.uniform(next(keys), shape, jnp.float32, -s, s)

    params = {}
    for i, (m, n, emb_dim) in enumerate(embedding_specs):
        params[f"emb{i}"] = 0.01 * jax.random.normal(next(keys), (n, emb_dim), jnp.float32)

    for suf, in_dim in (("l0", e), ("l0_rev", e), ("l1", 2 * H), ("l1_rev", 2 * H)):
        params[f"w_ih_{suf}"] = u((4 * H, in_dim))
        params[f"w_hh_{suf}"] = u((4 * H, H))
        params[f"b_ih_{suf}"] = u((4 * H,))
        params[f"b_hh_{suf}"] = u((4 * H,))

    params["lin_w"] = u((O, 2 * H))
    params["lin_b"] = u((O,))
    # TODO(synk): lstm2 / relu / softmax exist in the module's __init__ but are
    # never used in forward(), so they are intentionally not implemented.
    return params


# ---------------------------------- main ---------------------------------------
if __name__ == "__main__":
    embedding_specs = [(3, 50, 16), (5, 40, 16)]   # feature_count=8 (=T), e=16
    hidden_dim, output_dim, batch = 32, 10, 2
    feature_count = sum(m for m, _, _ in embedding_specs)

    key = jax.random.PRNGKey(0)
    k_par, k_f0, k_f1 = jax.random.split(key, 3)
    params = init_params(k_par, embedding_specs, hidden_dim, output_dim)

    feats0 = jax.random.randint(k_f0, (batch, 3), 0, 50, dtype=jnp.int32)
    feats1 = jax.random.randint(k_f1, (batch, 5), 0, 40, dtype=jnp.int32)
    features = jnp.concatenate([feats0, feats1], axis=1)           # (2, 8) int32

    out = lstm_tagger_forward(features, params, embedding_specs, hidden_dim, output_dim)
    out = jax.block_until_ready(out)

    ref = reference_forward(features, params, embedding_specs, hidden_dim, output_dim)
    ref = jax.block_until_ready(ref)

    assert out.shape == (batch, output_dim)
    assert jnp.allclose(out, ref, rtol=1e-4, atol=1e-4), (out, ref)
    print("KERNEL_OK")
</pallas_src>

<mosaic_0001>
module attributes {stable_mosaic.version = 11 : i64} {
  func.func @kernel(%arg0: memref<16x32xf32, #tpu.memory_space<vmem>>, %arg1: memref<32x256xf32, #tpu.memory_space<vmem>>, %arg2: memref<1x256xf32, #tpu.memory_space<vmem>>, %arg3: memref<64x256xf32, #tpu.memory_space<vmem>>, %arg4: memref<64x256xf32, #tpu.memory_space<vmem>>, %arg5: memref<1x256xf32, #tpu.memory_space<vmem>>, %arg6: memref<32x128xf32, #tpu.memory_space<vmem>>, %arg7: memref<64x10xf32, #tpu.memory_space<vmem>>, %arg8: memref<1x10xf32, #tpu.memory_space<vmem>>, %arg9: memref<2x10xf32, #tpu.memory_space<vmem>>, %arg10: memref<16x64xf32, #tpu.memory_space<vmem>>) attributes {dimension_semantics = [], scalar_prefetch = 0 : i64, scratch_operands = 1 : i64, tpu.core_type = #tpu.core_type<tc>} {
    %c0 = arith.constant 0 : index
    %c0_0 = arith.constant 0 : index
    %0 = vector.load %arg0[%c0, %c0_0] : memref<16x32xf32, #tpu.memory_space<vmem>>, vector<16x32xf32>
    %c0_1 = arith.constant 0 : index
    %c0_2 = arith.constant 0 : index
    %1 = vector.load %arg1[%c0_1, %c0_2] : memref<32x256xf32, #tpu.memory_space<vmem>>, vector<32x256xf32>
    %cst = arith.constant dense<0.000000e+00> : vector<16x256xf32>
    %2 = tpu.matmul %0, %1, %cst {dimension_numbers = #tpu.dot_dimension_numbers<[1], [0], [0], [1], [0, 0, 1, 1], [], []>} : vector<16x32xf32>, vector<32x256xf32>, vector<16x256xf32> -> vector<16x256xf32>
    %c0_3 = arith.constant 0 : index
    %c0_4 = arith.constant 0 : index
    %3 = vector.load %arg2[%c0_3, %c0_4] : memref<1x256xf32, #tpu.memory_space<vmem>>, vector<1x256xf32>
    %4 = vector.broadcast %3 : vector<1x256xf32> to vector<16x256xf32>
    %5 = arith.addf %2, %4 : vector<16x256xf32>
    %c0_5 = arith.constant 0 : index
    %c0_6 = arith.constant 0 : index
    %6 = vector.load %arg3[%c0_5, %c0_6] : memref<64x256xf32, #tpu.memory_space<vmem>>, vector<64x256xf32>
    %cst_7 = arith.constant 0.000000e+00 : f32
    %7 = vector.broadcast %cst_7 : f32 to vector<2x64xf32>
    %cst_8 = arith.constant 0.000000e+00 : f32
    %8 = vector.broadcast %cst_8 : f32 to vector<2x64xf32>
    %9 = vector.extract_strided_slice %5 {offsets = [0, 0], sizes = [2, 256], strides = [1, 1]} : vector<16x256xf32> to vector<2x256xf32>
    %cst_9 = arith.constant dense<0.000000e+00> : vector<2x256xf32>
    %10 = tpu.matmul %7, %6, %cst_9 {dimension_numbers = #tpu.dot_dimension_numbers<[1], [0], [0], [1], [0, 0, 1, 1], [], []>} : vector<2x64xf32>, vector<64x256xf32>, vector<2x256xf32> -> vector<2x256xf32>
    %11 = arith.addf %9, %10 : vector<2x256xf32>
    %12 = arith.negf %11 : vector<2x256xf32>
    %13 = math.exp %12 : vector<2x256xf32>
    %cst_10 = arith.constant 1.000000e+00 : f32
    %14 = vector.broadcast %cst_10 : f32 to vector<2x256xf32>
    %15 = arith.addf %14, %13 : vector<2x256xf32>
    %16 = arith.divf %14, %15 : vector<2x256xf32>
    %17 = vector.extract_strided_slice %11 {offsets = [0, 128], sizes = [2, 64], strides = [1, 1]} : vector<2x256xf32> to vector<2x64xf32>
    %18 = math.tanh %17 : vector<2x64xf32>
    %19 = vector.extract_strided_slice %16 {offsets = [0, 64], sizes = [2, 64], strides = [1, 1]} : vector<2x256xf32> to vector<2x64xf32>
    %20 = arith.mulf %19, %8 : vector<2x64xf32>
    %21 = vector.extract_strided_slice %16 {offsets = [0, 0], sizes = [2, 64], strides = [1, 1]} : vector<2x256xf32> to vector<2x64xf32>
    %22 = arith.mulf %21, %18 : vector<2x64xf32>
    %23 = arith.addf %20, %22 : vector<2x64xf32>
    %24 = vector.extract_strided_slice %16 {offsets = [0, 192], sizes = [2, 64], strides = [1, 1]} : vector<2x256xf32> to vector<2x64xf32>
    %25 = math.tanh %23 : vector<2x64xf32>
    %26 = arith.mulf %24, %25 : vector<2x64xf32>
    %27 = vector.extract_strided_slice %26 {offsets = [0, 0], sizes = [2, 32], strides = [1, 1]} : vector<2x64xf32> to vector<2x32xf32>
    %c0_11 = arith.constant 0 : index
    %c0_12 = arith.constant 0 : index
    %28 = vector.load %arg10[%c0_11, %c0_12] : memref<16x64xf32, #tpu.memory_space<vmem>>, vector<2x32xf32>
    tpu.vector_store %arg10[%c0_11, %c0_12], %27 {strides = array<i32>} : memref<16x64xf32, #tpu.memory_space<vmem>>, vector<2x32xf32>,
    %29 = vector.extract_strided_slice %26 {offsets = [0, 32], sizes = [2, 32], strides = [1, 1]} : vector<2x64xf32> to vector<2x32xf32>
    %c14 = arith.constant 14 : index
    %c32 = arith.constant 32 : index
    %30 = vector.load %arg10[%c14, %c32] : memref<16x64xf32, #tpu.memory_space<vmem>>, vector<2x32xf32>
    tpu.vector_store %arg10[%c14, %c32], %29 {strides = array<i32>} : memref<16x64xf32, #tpu.memory_space<vmem>>, vector<2x32xf32>,
    %31 = vector.extract_strided_slice %5 {offsets = [2, 0], sizes = [2, 256], strides = [1, 1]} : vector<16x256xf32> to vector<2x256xf32>
    %cst_13 = arith.constant dense<0.000000e+00> : vector<2x256xf32>
    %32 = tpu.matmul %26, %6, %cst_13 {dimension_numbers = #tpu.dot_dimension_numbers<[1], [0], [0], [1], [0, 0, 1, 1], [], []>} : vector<2x64xf32>, vector<64x256xf32>, vector<2x256xf32> -> vector<2x256xf32>
    %33 = arith.addf %31, %32 : vector<2x256xf32>
    %34 = arith.negf %33 : vector<2x256xf32>
    %35 = math.exp %34 : vector<2x256xf32>
    %cst_14 = arith.constant 1.000000e+00 : f32
    %36 = vector.broadcast %cst_14 : f32 to vector<2x256xf32>
    %37 = arith.addf %36, %35 : vector<2x256xf32>
    %38 = arith.divf %36, %37 : vector<2x256xf32>
    %39 = vector.extract_strided_slice %33 {offsets = [0, 128], sizes = [2, 64], strides = [1, 1]} : vector<2x256xf32> to vector<2x64xf32>
    %40 = math.tanh %39 : vector<2x64xf32>
    %41 = vector.extract_strided_slice %38 {offsets = [0, 64], sizes = [2, 64], strides = [1, 1]} : vector<2x256xf32> to vector<2x64xf32>
    %42 = arith.mulf %41, %23 : vector<2x64xf32>
    %43 = vector.extract_strided_slice %38 {offsets = [0, 0], sizes = [2, 64], strides = [1, 1]} : vector<2x256xf32> to vector<2x64xf32>
    %44 = arith.mulf %43, %40 : vector<2x64xf32>
    %45 = arith.addf %42, %44 : vector<2x64xf32>
    %46 = vector.extract_strided_slice %38 {offsets = [0, 192], sizes = [2, 64], strides = [1, 1]} : vector<2x256xf32> to vector<2x64xf32>
    %47 = math.tanh %45 : vector<2x64xf32>
    %48 = arith.mulf %46, %47 : vector<2x64xf32>
    %49 = vector.extract_strided_slice %48 {offsets = [0, 0], sizes = [2, 32], strides = [1, 1]} : vector<2x64xf32> to vector<2x32xf32>
    %c2 = arith.constant 2 : index
    %c0_15 = arith.constant 0 : index
    %50 = vector.load %arg10[%c2, %c0_15] : memref<16x64xf32, #tpu.memory_space<vmem>>, vector<2x32xf32>
    tpu.vector_store %arg10[%c2, %c0_15], %49 {strides = array<i32>} : memref<16x64xf32, #tpu.memory_space<vmem>>, vector<2x32xf32>,
    %51 = vector.extract_strided_slice %48 {offsets = [0, 32], sizes = [2, 32], strides = [1, 1]} : vector<2x64xf32> to vector<2x32xf32>
    %c12 = arith.constant 12 : index
    %c32_16 = arith.constant 32 : index
    %52 = vector.load %arg10[%c12, %c32_16] : memref<16x64xf32, #tpu.memory_space<vmem>>, vector<2x32xf32>
    tpu.vector_store %arg10[%c12, %c32_16], %51 {strides = array<i32>} : memref<16x64xf32, #tpu.memory_space<vmem>>, vector<2x32xf32>,
    %53 = vector.extract_strided_slice %5 {offsets = [4, 0], sizes = [2, 256], strides = [1, 1]} : vector<16x256xf32> to vector<2x256xf32>
    %cst_17 = arith.constant dense<0.000000e+00> : vector<2x256xf32>
    %54 = tpu.matmul %48, %6, %cst_17 {dimension_numbers = #tpu.dot_dimension_numbers<[1], [0], [0], [1], [0, 0, 1, 1], [], []>} : vector<2x64xf32>, vector<64x256xf32>, vector<2x256xf32> -> vector<2x256xf32>
    %55 = arith.addf %53, %54 : vector<2x256xf32>
    %56 = arith.negf %55 : vector<2x256xf32>
    %57 = math.exp %56 : vector<2x256xf32>
    %cst_18 = arith.constant 1.000000e+00 : f32
    %58 = vector.broadcast %cst_18 : f32 to vector<2x256xf32>
    %59 = arith.addf %58, %57 : vector<2x256xf32>
    %60 = arith.divf %58, %59 : vector<2x256xf32>
    %61 = vector.extract_strided_slice %55 {offsets = [0, 128], sizes = [2, 64], strides = [1, 1]} : vector<2x256xf32> to vector<2x64xf32>
    %62 = math.tanh %61 : vector<2x64xf32>
    %63 = vector.extract_strided_slice %60 {offsets = [0, 64], sizes = [2, 64], strides = [1, 1]} : vector<2x256xf32> to vector<2x64xf32>
    %64 = arith.mulf %63, %45 : vector<2x64xf32>
    %65 = vector.extract_strided_slice %60 {offsets = [0, 0], sizes = [2, 64], strides = [1, 1]} : vector<2x256xf32> to vector<2x64xf32>
    %66 = arith.mulf %65, %62 : vector<2x64xf32>
    %67 = arith.addf %64, %66 : vector<2x64xf32>
    %68 = vector.extract_strided_slice %60 {offsets = [0, 192], sizes = [2, 64], strides = [1, 1]} : vector<2x256xf32> to vector<2x64xf32>
    %69 = math.tanh %67 : vector<2x64xf32>
    %70 = arith.mulf %68, %69 : vector<2x64xf32>
    %71 = vector.extract_strided_slice %70 {offsets = [0, 0], sizes = [2, 32], strides = [1, 1]} : vector<2x64xf32> to vector<2x32xf32>
    %c4 = arith.constant 4 : index
    %c0_19 = arith.constant 0 : index
    %72 = vector.load %arg10[%c4, %c0_19] : memref<16x64xf32, #tpu.memory_space<vmem>>, vector<2x32xf32>
    tpu.vector_store %arg10[%c4, %c0_19], %71 {strides = array<i32>} : memref<16x64xf32, #tpu.memory_space<vmem>>, vector<2x32xf32>,
    %73 = vector.extract_strided_slice %70 {offsets = [0, 32], sizes = [2, 32], strides = [1, 1]} : vector<2x64xf32> to vector<2x32xf32>
    %c10 = arith.constant 10 : index
    %c32_20 = arith.constant 32 : index
    %74 = vector.load %arg10[%c10, %c32_20] : memref<16x64xf32, #tpu.memory_space<vmem>>, vector<2x32xf32>
    tpu.vector_store %arg10[%c10, %c32_20], %73 {strides = array<i32>} : memref<16x64xf32, #tpu.memory_space<vmem>>, vector<2x32xf32>,
    %75 = vector.extract_strided_slice %5 {offsets = [6, 0], sizes = [2, 256], strides = [1, 1]} : vector<16x256xf32> to vector<2x256xf32>
    %cst_21 = arith.constant dense<0.000000e+00> : vector<2x256xf32>
    %76 = tpu.matmul %70, %6, %cst_21 {dimension_numbers = #tpu.dot_dimension_numbers<[1], [0], [0], [1], [0, 0, 1, 1], [], []>} : vector<2x64xf32>, vector<64x256xf32>, vector<2x256xf32> -> vector<2x256xf32>
    %77 = arith.addf %75, %76 : vector<2x256xf32>
    %78 = arith.negf %77 : vector<2x256xf32>
    %79 = math.exp %78 : vector<2x256xf32>
    %cst_22 = arith.constant 1.000000e+00 : f32
    %80 = vector.broadcast %cst_22 : f32 to vector<2x256xf32>
    %81 = arith.addf %80, %79 : vector<2x256xf32>
    %82 = arith.divf %80, %81 : vector<2x256xf32>
    %83 = vector.extract_strided_slice %77 {offsets = [0, 128], sizes = [2, 64], strides = [1, 1]} : vector<2x256xf32> to vector<2x64xf32>
    %84 = math.tanh %83 : vector<2x64xf32>
    %85 = vector.extract_strided_slice %82 {offsets = [0, 64], sizes = [2, 64], strides = [1, 1]} : vector<2x256xf32> to vector<2x64xf32>
    %86 = arith.mulf %85, %67 : vector<2x64xf32>
    %87 = vector.extract_strided_slice %82 {offsets = [0, 0], sizes = [2, 64], strides = [1, 1]} : vector<2x256xf32> to vector<2x64xf32>
    %88 = arith.mulf %87, %84 : vector<2x64xf32>
    %89 = arith.addf %86, %88 : vector<2x64xf32>
    %90 = vector.extract_strided_slice %82 {offsets = [0, 192], sizes = [2, 64], strides = [1, 1]} : vector<2x256xf32> to vector<2x64xf32>
    %91 = math.tanh %89 : vector<2x64xf32>
    %92 = arith.mulf %90, %91 : vector<2x64xf32>
    %93 = vector.extract_strided_slice %92 {offsets = [0, 0], sizes = [2, 32], strides = [1, 1]} : vector<2x64xf32> to vector<2x32xf32>
    %c6 = arith.constant 6 : index
    %c0_23 = arith.constant 0 : index
    %94 = vector.load %arg10[%c6, %c0_23] : memref<16x64xf32, #tpu.memory_space<vmem>>, vector<2x32xf32>
    tpu.vector_store %arg10[%c6, %c0_23], %93 {strides = array<i32>} : memref<16x64xf32, #tpu.memory_space<vmem>>, vector<2x32xf32>,
    %95 = vector.extract_strided_slice %92 {offsets = [0, 32], sizes = [2, 32], strides = [1, 1]} : vector<2x64xf32> to vector<2x32xf32>
    %c8 = arith.constant 8 : index
    %c32_24 = arith.constant 32 : index
    %96 = vector.load %arg10[%c8, %c32_24] : memref<16x64xf32, #tpu.memory_space<vmem>>, vector<2x32xf32>
    tpu.vector_store %arg10[%c8, %c32_24], %95 {strides = array<i32>} : memref<16x64xf32, #tpu.memory_space<vmem>>, vector<2x32xf32>,
    %97 = vector.extract_strided_slice %5 {offsets = [8, 0], sizes = [2, 256], strides = [1, 1]} : vector<16x256xf32> to vector<2x256xf32>
    %cst_25 = arith.constant dense<0.000000e+00> : vector<2x256xf32>
    %98 = tpu.matmul %92, %6, %cst_25 {dimension_numbers = #tpu.dot_dimension_numbers<[1], [0], [0], [1], [0, 0, 1, 1], [], []>} : vector<2x64xf32>, vector<64x256xf32>, vector<2x256xf32> -> vector<2x256xf32>
    %99 = arith.addf %97, %98 : vector<2x256xf32>
    %100 = arith.negf %99 : vector<2x256xf32>
    %101 = math.exp %100 : vector<2x256xf32>
    %cst_26 = arith.constant 1.000000e+00 : f32
    %102 = vector.broadcast %cst_26 : f32 to vector<2x256xf32>
    %103 = arith.addf %102, %101 : vector<2x256xf32>
    %104 = arith.divf %102, %103 : vector<2x256xf32>
    %105 = vector.extract_strided_slice %99 {offsets = [0, 128], sizes = [2, 64], strides = [1, 1]} : vector<2x256xf32> to vector<2x64xf32>
    %106 = math.tanh %105 : vector<2x64xf32>
    %107 = vector.extract_strided_slice %104 {offsets = [0, 64], sizes = [2, 64], strides = [1, 1]} : vector<2x256xf32> to vector<2x64xf32>
    %108 = arith.mulf %107, %89 : vector<2x64xf32>
    %109 = vector.extract_strided_slice %104 {offsets = [0, 0], sizes = [2, 64], strides = [1, 1]} : vector<2x256xf32> to vector<2x64xf32>
    %110 = arith.mulf %109, %106 : vector<2x64xf32>
    %111 = arith.addf %108, %110 : vector<2x64xf32>
    %112 = vector.extract_strided_slice %104 {offsets = [0, 192], sizes = [2, 64], strides = [1, 1]} : vector<2x256xf32> to vector<2x64xf32>
    %113 = math.tanh %111 : vector<2x64xf32>
    %114 = arith.mulf %112, %113 : vector<2x64xf32>
    %115 = vector.extract_strided_slice %114 {offsets = [0, 0], sizes = [2, 32], strides = [1, 1]} : vector<2x64xf32> to vector<2x32xf32>
    %c8_27 = arith.constant 8 : index
    %c0_28 = arith.constant 0 : index
    %116 = vector.load %arg10[%c8_27, %c0_28] : memref<16x64xf32, #tpu.memory_space<vmem>>, vector<2x32xf32>
    tpu.vector_store %arg10[%c8_27, %c0_28], %115 {strides = array<i32>} : memref<16x64xf32, #tpu.memory_space<vmem>>, vector<2x32xf32>,
    %117 = vector.extract_strided_slice %114 {offsets = [0, 32], sizes = [2, 32], strides = [1, 1]} : vector<2x64xf32> to vector<2x32xf32>
    %c6_29 = arith.constant 6 : index
    %c32_30 = arith.constant 32 : index
    %118 = vector.load %arg10[%c6_29, %c32_30] : memref<16x64xf32, #tpu.memory_space<vmem>>, vector<2x32xf32>
    tpu.vector_store %arg10[%c6_29, %c32_30], %117 {strides = array<i32>} : memref<16x64xf32, #tpu.memory_space<vmem>>, vector<2x32xf32>,
    %119 = vector.extract_strided_slice %5 {offsets = [10, 0], sizes = [2, 256], strides = [1, 1]} : vector<16x256xf32> to vector<2x256xf32>
    %cst_31 = arith.constant dense<0.000000e+00> : vector<2x256xf32>
    %120 = tpu.matmul %114, %6, %cst_31 {dimension_numbers = #tpu.dot_dimension_numbers<[1], [0], [0], [1], [0, 0, 1, 1], [], []>} : vector<2x64xf32>, vector<64x256xf32>, vector<2x256xf32> -> vector<2x256xf32>
    %121 = arith.addf %119, %120 : vector<2x256xf32>
    %122 = arith.negf %121 : vector<2x256xf32>
    %123 = math.exp %122 : vector<2x256xf32>
    %cst_32 = arith.constant 1.000000e+00 : f32
    %124 = vector.broadcast %cst_32 : f32 to vector<2x256xf32>
    %125 = arith.addf %124, %123 : vector<2x256xf32>
    %126 = arith.divf %124, %125 : vector<2x256xf32>
    %127 = vector.extract_strided_slice %121 {offsets = [0, 128], sizes = [2, 64], strides = [1, 1]} : vector<2x256xf32> to vector<2x64xf32>
    %128 = math.tanh %127 : vector<2x64xf32>
    %129 = vector.extract_strided_slice %126 {offsets = [0, 64], sizes = [2, 64], strides = [1, 1]} : vector<2x256xf32> to vector<2x64xf32>
    %130 = arith.mulf %129, %111 : vector<2x64xf32>
    %131 = vector.extract_strided_slice %126 {offsets = [0, 0], sizes = [2, 64], strides = [1, 1]} : vector<2x256xf32> to vector<2x64xf32>
    %132 = arith.mulf %131, %128 : vector<2x64xf32>
    %133 = arith.addf %130, %132 : vector<2x64xf32>
    %134 = vector.extract_strided_slice %126 {offsets = [0, 192], sizes = [2, 64], strides = [1, 1]} : vector<2x256xf32> to vector<2x64xf32>
    %135 = math.tanh %133 : vector<2x64xf32>
    %136 = arith.mulf %134, %135 : vector<2x64xf32>
    %137 = vector.extract_strided_slice %136 {offsets = [0, 0], sizes = [2, 32], strides = [1, 1]} : vector<2x64xf32> to vector<2x32xf32>
    %c10_33 = arith.constant 10 : index
    %c0_34 = arith.constant 0 : index
    %138 = vector.load %arg10[%c10_33, %c0_34] : memref<16x64xf32, #tpu.memory_space<vmem>>, vector<2x32xf32>
    tpu.vector_store %arg10[%c10_33, %c0_34], %137 {strides = array<i32>} : memref<16x64xf32, #tpu.memory_space<vmem>>, vector<2x32xf32>,
    %139 = vector.extract_strided_slice %136 {offsets = [0, 32], sizes = [2, 32], strides = [1, 1]} : vector<2x64xf32> to vector<2x32xf32>
    %c4_35 = arith.constant 4 : index
    %c32_36 = arith.constant 32 : index
    %140 = vector.load %arg10[%c4_35, %c32_36] : memref<16x64xf32, #tpu.memory_space<vmem>>, vector<2x32xf32>
    tpu.vector_store %arg10[%c4_35, %c32_36], %139 {strides = array<i32>} : memref<16x64xf32, #tpu.memory_space<vmem>>, vector<2x32xf32>,
    %141 = vector.extract_strided_slice %5 {offsets = [12, 0], sizes = [2, 256], strides = [1, 1]} : vector<16x256xf32> to vector<2x256xf32>
    %cst_37 = arith.constant dense<0.000000e+00> : vector<2x256xf32>
    %142 = tpu.matmul %136, %6, %cst_37 {dimension_numbers = #tpu.dot_dimension_numbers<[1], [0], [0], [1], [0, 0, 1, 1], [], []>} : vector<2x64xf32>, vector<64x256xf32>, vector<2x256xf32> -> vector<2x256xf32>
    %143 = arith.addf %141, %142 : vector<2x256xf32>
    %144 = arith.negf %143 : vector<2x256xf32>
    %145 = math.exp %144 : vector<2x256xf32>
    %cst_38 = arith.constant 1.000000e+00 : f32
    %146 = vector.broadcast %cst_38 : f32 to vector<2x256xf32>
    %147 = arith.addf %146, %145 : vector<2x256xf32>
    %148 = arith.divf %146, %147 : vector<2x256xf32>
    %149 = vector.extract_strided_slice %143 {offsets = [0, 128], sizes = [2, 64], strides = [1, 1]} : vector<2x256xf32> to vector<2x64xf32>
    %150 = math.tanh %149 : vector<2x64xf32>
    %151 = vector.extract_strided_slice %148 {offsets = [0, 64], sizes = [2, 64], strides = [1, 1]} : vector<2x256xf32> to vector<2x64xf32>
    %152 = arith.mulf %151, %133 : vector<2x64xf32>
    %153 = vector.extract_strided_slice %148 {offsets = [0, 0], sizes = [2, 64], strides = [1, 1]} : vector<2x256xf32> to vector<2x64xf32>
    %154 = arith.mulf %153, %150 : vector<2x64xf32>
    %155 = arith.addf %152, %154 : vector<2x64xf32>
    %156 = vector.extract_strided_slice %148 {offsets = [0, 192], sizes = [2, 64], strides = [1, 1]} : vector<2x256xf32> to vector<2x64xf32>
    %157 = math.tanh %155 : vector<2x64xf32>
    %158 = arith.mulf %156, %157 : vector<2x64xf32>
    %159 = vector.extract_strided_slice %158 {offsets = [0, 0], sizes = [2, 32], strides = [1, 1]} : vector<2x64xf32> to vector<2x32xf32>
    %c12_39 = arith.constant 12 : index
    %c0_40 = arith.constant 0 : index
    %160 = vector.load %arg10[%c12_39, %c0_40] : memref<16x64xf32, #tpu.memory_space<vmem>>, vector<2x32xf32>
    tpu.vector_store %arg10[%c12_39, %c0_40], %159 {strides = array<i32>} : memref<16x64xf32, #tpu.memory_space<vmem>>, vector<2x32xf32>,
    %161 = vector.extract_strided_slice %158 {offsets = [0, 32], sizes = [2, 32], strides = [1, 1]} : vector<2x64xf32> to vector<2x32xf32>
    %c2_41 = arith.constant 2 : index
    %c32_42 = arith.constant 32 : index
    %162 = vector.load %arg10[%c2_41, %c32_42] : memref<16x64xf32, #tpu.memory_space<vmem>>, vector<2x32xf32>
    tpu.vector_store %arg10[%c2_41, %c32_42], %161 {strides = array<i32>} : memref<16x64xf32, #tpu.memory_space<vmem>>, vector<2x32xf32>,
    %163 = vector.extract_strided_slice %5 {offsets = [14, 0], sizes = [2, 256], strides = [1, 1]} : vector<16x256xf32> to vector<2x256xf32>
    %cst_43 = arith.constant dense<0.000000e+00> : vector<2x256xf32>
    %164 = tpu.matmul %158, %6, %cst_43 {dimension_numbers = #tpu.dot_dimension_numbers<[1], [0], [0], [1], [0, 0, 1, 1], [], []>} : vector<2x64xf32>, vector<64x256xf32>, vector<2x256xf32> -> vector<2x256xf32>
    %165 = arith.addf %163, %164 : vector<2x256xf32>
    %166 = arith.negf %165 : vector<2x256xf32>
    %167 = math.exp %166 : vector<2x256xf32>
    %cst_44 = arith.constant 1.000000e+00 : f32
    %168 = vector.broadcast %cst_44 : f32 to vector<2x256xf32>
    %169 = arith.addf %168, %167 : vector<2x256xf32>
    %170 = arith.divf %168, %169 : vector<2x256xf32>
    %171 = vector.extract_strided_slice %165 {offsets = [0, 128], sizes = [2, 64], strides = [1, 1]} : vector<2x256xf32> to vector<2x64xf32>
    %172 = math.tanh %171 : vector<2x64xf32>
    %173 = vector.extract_strided_slice %170 {offsets = [0, 64], sizes = [2, 64], strides = [1, 1]} : vector<2x256xf32> to vector<2x64xf32>
    %174 = arith.mulf %173, %155 : vector<2x64xf32>
    %175 = vector.extract_strided_slice %170 {offsets = [0, 0], sizes = [2, 64], strides = [1, 1]} : vector<2x256xf32> to vector<2x64xf32>
    %176 = arith.mulf %175, %172 : vector<2x64xf32>
    %177 = arith.addf %174, %176 : vector<2x64xf32>
    %178 = vector.extract_strided_slice %170 {offsets = [0, 192], sizes = [2, 64], strides = [1, 1]} : vector<2x256xf32> to vector<2x64xf32>
    %179 = math.tanh %177 : vector<2x64xf32>
    %180 = arith.mulf %178, %179 : vector<2x64xf32>
    %181 = vector.extract_strided_slice %180 {offsets = [0, 0], sizes = [2, 32], strides = [1, 1]} : vector<2x64xf32> to vector<2x32xf32>
    %c14_45 = arith.constant 14 : index
    %c0_46 = arith.constant 0 : index
    %182 = vector.load %arg10[%c14_45, %c0_46] : memref<16x64xf32, #tpu.memory_space<vmem>>, vector<2x32xf32>
    tpu.vector_store %arg10[%c14_45, %c0_46], %181 {strides = array<i32>} : memref<16x64xf32, #tpu.memory_space<vmem>>, vector<2x32xf32>,
    %183 = vector.extract_strided_slice %180 {offsets = [0, 32], sizes = [2, 32], strides = [1, 1]} : vector<2x64xf32> to vector<2x32xf32>
    %c0_47 = arith.constant 0 : index
    %c32_48 = arith.constant 32 : index
    %184 = vector.load %arg10[%c0_47, %c32_48] : memref<16x64xf32, #tpu.memory_space<vmem>>, vector<2x32xf32>
    tpu.vector_store %arg10[%c0_47, %c32_48], %183 {strides = array<i32>} : memref<16x64xf32, #tpu.memory_space<vmem>>, vector<2x32xf32>,
    %c0_49 = arith.constant 0 : index
    %c0_50 = arith.constant 0 : index
    %185 = vector.load %arg10[%c0_49, %c0_50] : memref<16x64xf32, #tpu.memory_space<vmem>>, vector<16x64xf32>
    %c0_51 = arith.constant 0 : index
    %c0_52 = arith.constant 0 : index
    %186 = vector.load %arg4[%c0_51, %c0_52] : memref<64x256xf32, #tpu.memory_space<vmem>>, vector<64x256xf32>
    %cst_53 = arith.constant dense<0.000000e+00> : vector<16x256xf32>
    %187 = tpu.matmul %185, %186, %cst_53 {dimension_numbers = #tpu.dot_dimension_numbers<[1], [0], [0], [1], [0, 0, 1, 1], [], []>} : vector<16x64xf32>, vector<64x256xf32>, vector<16x256xf32> -> vector<16x256xf32>
    %c0_54 = arith.constant 0 : index
    %c0_55 = arith.constant 0 : index
    %188 = vector.load %arg5[%c0_54, %c0_55] : memref<1x256xf32, #tpu.memory_space<vmem>>, vector<1x256xf32>
    %189 = vector.broadcast %188 : vector<1x256xf32> to vector<16x256xf32>
    %190 = arith.addf %187, %189 : vector<16x256xf32>
    %c0_56 = arith.constant 0 : index
    %c0_57 = arith.constant 0 : index
    %191 = vector.load %arg6[%c0_56, %c0_57] : memref<32x128xf32, #tpu.memory_space<vmem>>, vector<32x128xf32>
    %cst_58 = arith.constant 0.000000e+00 : f32
    %192 = vector.broadcast %cst_58 : f32 to vector<2x32xf32>
    %cst_59 = arith.constant 0.000000e+00 : f32
    %193 = vector.broadcast %cst_59 : f32 to vector<2x32xf32>
    %194 = vector.extract_strided_slice %190 {offsets = [0, 0], sizes = [2, 128], strides = [1, 1]} : vector<16x256xf32> to vector<2x128xf32>
    %cst_60 = arith.constant dense<0.000000e+00> : vector<2x128xf32>
    %195 = tpu.matmul %192, %191, %cst_60 {dimension_numbers = #tpu.dot_dimension_numbers<[1], [0], [0], [1], [0, 0, 1, 1], [], []>} : vector<2x32xf32>, vector<32x128xf32>, vector<2x128xf32> -> vector<2x128xf32>
    %196 = arith.addf %194, %195 : vector<2x128xf32>
    %197 = arith.negf %196 : vector<2x128xf32>
    %198 = math.exp %197 : vector<2x128xf32>
    %cst_61 = arith.constant 1.000000e+00 : f32
    %199 = vector.broadcast %cst_61 : f32 to vector<2x128xf32>
    %200 = arith.addf %199, %198 : vector<2x128xf32>
    %201 = arith.divf %199, %200 : vector<2x128xf32>
    %202 = vector.extract_strided_slice %196 {offsets = [0, 64], sizes = [2, 32], strides = [1, 1]} : vector<2x128xf32> to vector<2x32xf32>
    %203 = math.tanh %202 : vector<2x32xf32>
    %204 = vector.extract_strided_slice %201 {offsets = [0, 32], sizes = [2, 32], strides = [1, 1]} : vector<2x128xf32> to vector<2x32xf32>
    %205 = arith.mulf %204, %193 : vector<2x32xf32>
    %206 = vector.extract_strided_slice %201 {offsets = [0, 0], sizes = [2, 32], strides = [1, 1]} : vector<2x128xf32> to vector<2x32xf32>
    %207 = arith.mulf %206, %203 : vector<2x32xf32>
    %208 = arith.addf %205, %207 : vector<2x32xf32>
    %209 = vector.extract_strided_slice %201 {offsets = [0, 96], sizes = [2, 32], strides = [1, 1]} : vector<2x128xf32> to vector<2x32xf32>
    %210 = math.tanh %208 : vector<2x32xf32>
    %211 = arith.mulf %209, %210 : vector<2x32xf32>
    %212 = vector.extract_strided_slice %190 {offsets = [2, 0], sizes = [2, 128], strides = [1, 1]} : vector<16x256xf32> to vector<2x128xf32>
    %cst_62 = arith.constant dense<0.000000e+00> : vector<2x128xf32>
    %213 = tpu.matmul %211, %191, %cst_62 {dimension_numbers = #tpu.dot_dimension_numbers<[1], [0], [0], [1], [0, 0, 1, 1], [], []>} : vector<2x32xf32>, vector<32x128xf32>, vector<2x128xf32> -> vector<2x128xf32>
    %214 = arith.addf %212, %213 : vector<2x128xf32>
    %215 = arith.negf %214 : vector<2x128xf32>
    %216 = math.exp %215 : vector<2x128xf32>
    %cst_63 = arith.constant 1.000000e+00 : f32
    %217 = vector.broadcast %cst_63 : f32 to vector<2x128xf32>
    %218 = arith.addf %217, %216 : vector<2x128xf32>
    %219 = arith.divf %217, %218 : vector<2x128xf32>
    %220 = vector.extract_strided_slice %214 {offsets = [0, 64], sizes = [2, 32], strides = [1, 1]} : vector<2x128xf32> to vector<2x32xf32>
    %221 = math.tanh %220 : vector<2x32xf32>
    %222 = vector.extract_strided_slice %219 {offsets = [0, 32], sizes = [2, 32], strides = [1, 1]} : vector<2x128xf32> to vector<2x32xf32>
    %223 = arith.mulf %222, %208 : vector<2x32xf32>
    %224 = vector.extract_strided_slice %219 {offsets = [0, 0], sizes = [2, 32], strides = [1, 1]} : vector<2x128xf32> to vector<2x32xf32>
    %225 = arith.mulf %224, %221 : vector<2x32xf32>
    %226 = arith.addf %223, %225 : vector<2x32xf32>
    %227 = vector.extract_strided_slice %219 {offsets = [0, 96], sizes = [2, 32], strides = [1, 1]} : vector<2x128xf32> to vector<2x32xf32>
    %228 = math.tanh %226 : vector<2x32xf32>
    %229 = arith.mulf %227, %228 : vector<2x32xf32>
    %230 = vector.extract_strided_slice %190 {offsets = [4, 0], sizes = [2, 128], strides = [1, 1]} : vector<16x256xf32> to vector<2x128xf32>
    %cst_64 = arith.constant dense<0.000000e+00> : vector<2x128xf32>
    %231 = tpu.matmul %229, %191, %cst_64 {dimension_numbers = #tpu.dot_dimension_numbers<[1], [0], [0], [1], [0, 0, 1, 1], [], []>} : vector<2x32xf32>, vector<32x128xf32>, vector<2x128xf32> -> vector<2x128xf32>
    %232 = arith.addf %230, %231 : vector<2x128xf32>
    %233 = arith.negf %232 : vector<2x128xf32>
    %234 = math.exp %233 : vector<2x128xf32>
    %cst_65 = arith.constant 1.000000e+00 : f32
    %235 = vector.broadcast %cst_65 : f32 to vector<2x128xf32>
    %236 = arith.addf %235, %234 : vector<2x128xf32>
    %237 = arith.divf %235, %236 : vector<2x128xf32>
    %238 = vector.extract_strided_slice %232 {offsets = [0, 64], sizes = [2, 32], strides = [1, 1]} : vector<2x128xf32> to vector<2x32xf32>
    %239 = math.tanh %238 : vector<2x32xf32>
    %240 = vector.extract_strided_slice %237 {offsets = [0, 32], sizes = [2, 32], strides = [1, 1]} : vector<2x128xf32> to vector<2x32xf32>
    %241 = arith.mulf %240, %226 : vector<2x32xf32>
    %242 = vector.extract_strided_slice %237 {offsets = [0, 0], sizes = [2, 32], strides = [1, 1]} : vector<2x128xf32> to vector<2x32xf32>
    %243 = arith.mulf %242, %239 : vector<2x32xf32>
    %244 = arith.addf %241, %243 : vector<2x32xf32>
    %245 = vector.extract_strided_slice %237 {offsets = [0, 96], sizes = [2, 32], strides = [1, 1]} : vector<2x128xf32> to vector<2x32xf32>
    %246 = math.tanh %244 : vector<2x32xf32>
    %247 = arith.mulf %245, %246 : vector<2x32xf32>
    %248 = vector.extract_strided_slice %190 {offsets = [6, 0], sizes = [2, 128], strides = [1, 1]} : vector<16x256xf32> to vector<2x128xf32>
    %cst_66 = arith.constant dense<0.000000e+00> : vector<2x128xf32>
    %249 = tpu.matmul %247, %191, %cst_66 {dimension_numbers = #tpu.dot_dimension_numbers<[1], [0], [0], [1], [0, 0, 1, 1], [], []>} : vector<2x32xf32>, vector<32x128xf32>, vector<2x128xf32> -> vector<2x128xf32>
    %250 = arith.addf %248, %249 : vector<2x128xf32>
    %251 = arith.negf %250 : vector<2x128xf32>
    %252 = math.exp %251 : vector<2x128xf32>
    %cst_67 = arith.constant 1.000000e+00 : f32
    %253 = vector.broadcast %cst_67 : f32 to vector<2x128xf32>
    %254 = arith.addf %253, %252 : vector<2x128xf32>
    %255 = arith.divf %253, %254 : vector<2x128xf32>
    %256 = vector.extract_strided_slice %250 {offsets = [0, 64], sizes = [2, 32], strides = [1, 1]} : vector<2x128xf32> to vector<2x32xf32>
    %257 = math.tanh %256 : vector<2x32xf32>
    %258 = vector.extract_strided_slice %255 {offsets = [0, 32], sizes = [2, 32], strides = [1, 1]} : vector<2x128xf32> to vector<2x32xf32>
    %259 = arith.mulf %258, %244 : vector<2x32xf32>
    %260 = vector.extract_strided_slice %255 {offsets = [0, 0], sizes = [2, 32], strides = [1, 1]} : vector<2x128xf32> to vector<2x32xf32>
    %261 = arith.mulf %260, %257 : vector<2x32xf32>
    %262 = arith.addf %259, %261 : vector<2x32xf32>
    %263 = vector.extract_strided_slice %255 {offsets = [0, 96], sizes = [2, 32], strides = [1, 1]} : vector<2x128xf32> to vector<2x32xf32>
    %264 = math.tanh %262 : vector<2x32xf32>
    %265 = arith.mulf %263, %264 : vector<2x32xf32>
    %266 = vector.extract_strided_slice %190 {offsets = [8, 0], sizes = [2, 128], strides = [1, 1]} : vector<16x256xf32> to vector<2x128xf32>
    %cst_68 = arith.constant dense<0.000000e+00> : vector<2x128xf32>
    %267 = tpu.matmul %265, %191, %cst_68 {dimension_numbers = #tpu.dot_dimension_numbers<[1], [0], [0], [1], [0, 0, 1, 1], [], []>} : vector<2x32xf32>, vector<32x128xf32>, vector<2x128xf32> -> vector<2x128xf32>
    %268 = arith.addf %266, %267 : vector<2x128xf32>
    %269 = arith.negf %268 : vector<2x128xf32>
    %270 = math.exp %269 : vector<2x128xf32>
    %cst_69 = arith.constant 1.000000e+00 : f32
    %271 = vector.broadcast %cst_69 : f32 to vector<2x128xf32>
    %272 = arith.addf %271, %270 : vector<2x128xf32>
    %273 = arith.divf %271, %272 : vector<2x128xf32>
    %274 = vector.extract_strided_slice %268 {offsets = [0, 64], sizes = [2, 32], strides = [1, 1]} : vector<2x128xf32> to vector<2x32xf32>
    %275 = math.tanh %274 : vector<2x32xf32>
    %276 = vector.extract_strided_slice %273 {offsets = [0, 32], sizes = [2, 32], strides = [1, 1]} : vector<2x128xf32> to vector<2x32xf32>
    %277 = arith.mulf %276, %262 : vector<2x32xf32>
    %278 = vector.extract_strided_slice %273 {offsets = [0, 0], sizes = [2, 32], strides = [1, 1]} : vector<2x128xf32> to vector<2x32xf32>
    %279 = arith.mulf %278, %275 : vector<2x32xf32>
    %280 = arith.addf %277, %279 : vector<2x32xf32>
    %281 = vector.extract_strided_slice %273 {offsets = [0, 96], sizes = [2, 32], strides = [1, 1]} : vector<2x128xf32> to vector<2x32xf32>
    %282 = math.tanh %280 : vector<2x32xf32>
    %283 = arith.mulf %281, %282 : vector<2x32xf32>
    %284 = vector.extract_strided_slice %190 {offsets = [10, 0], sizes = [2, 128], strides = [1, 1]} : vector<16x256xf32> to vector<2x128xf32>
    %cst_70 = arith.constant dense<0.000000e+00> : vector<2x128xf32>
    %285 = tpu.matmul %283, %191, %cst_70 {dimension_numbers = #tpu.dot_dimension_numbers<[1], [0], [0], [1], [0, 0, 1, 1], [], []>} : vector<2x32xf32>, vector<32x128xf32>, vector<2x128xf32> -> vector<2x128xf32>
    %286 = arith.addf %284, %285 : vector<2x128xf32>
    %287 = arith.negf %286 : vector<2x128xf32>
    %288 = math.exp %287 : vector<2x128xf32>
    %cst_71 = arith.constant 1.000000e+00 : f32
    %289 = vector.broadcast %cst_71 : f32 to vector<2x128xf32>
    %290 = arith.addf %289, %288 : vector<2x128xf32>
    %291 = arith.divf %289, %290 : vector<2x128xf32>
    %292 = vector.extract_strided_slice %286 {offsets = [0, 64], sizes = [2, 32], strides = [1, 1]} : vector<2x128xf32> to vector<2x32xf32>
    %293 = math.tanh %292 : vector<2x32xf32>
    %294 = vector.extract_strided_slice %291 {offsets = [0, 32], sizes = [2, 32], strides = [1, 1]} : vector<2x128xf32> to vector<2x32xf32>
    %295 = arith.mulf %294, %280 : vector<2x32xf32>
    %296 = vector.extract_strided_slice %291 {offsets = [0, 0], sizes = [2, 32], strides = [1, 1]} : vector<2x128xf32> to vector<2x32xf32>
    %297 = arith.mulf %296, %293 : vector<2x32xf32>
    %298 = arith.addf %295, %297 : vector<2x32xf32>
    %299 = vector.extract_strided_slice %291 {offsets = [0, 96], sizes = [2, 32], strides = [1, 1]} : vector<2x128xf32> to vector<2x32xf32>
    %300 = math.tanh %298 : vector<2x32xf32>
    %301 = arith.mulf %299, %300 : vector<2x32xf32>
    %302 = vector.extract_strided_slice %190 {offsets = [12, 0], sizes = [2, 128], strides = [1, 1]} : vector<16x256xf32> to vector<2x128xf32>
    %cst_72 = arith.constant dense<0.000000e+00> : vector<2x128xf32>
    %303 = tpu.matmul %301, %191, %cst_72 {dimension_numbers = #tpu.dot_dimension_numbers<[1], [0], [0], [1], [0, 0, 1, 1], [], []>} : vector<2x32xf32>, vector<32x128xf32>, vector<2x128xf32> -> vector<2x128xf32>
    %304 = arith.addf %302, %303 : vector<2x128xf32>
    %305 = arith.negf %304 : vector<2x128xf32>
    %306 = math.exp %305 : vector<2x128xf32>
    %cst_73 = arith.constant 1.000000e+00 : f32
    %307 = vector.broadcast %cst_73 : f32 to vector<2x128xf32>
    %308 = arith.addf %307, %306 : vector<2x128xf32>
    %309 = arith.divf %307, %308 : vector<2x128xf32>
    %310 = vector.extract_strided_slice %304 {offsets = [0, 64], sizes = [2, 32], strides = [1, 1]} : vector<2x128xf32> to vector<2x32xf32>
    %311 = math.tanh %310 : vector<2x32xf32>
    %312 = vector.extract_strided_slice %309 {offsets = [0, 32], sizes = [2, 32], strides = [1, 1]} : vector<2x128xf32> to vector<2x32xf32>
    %313 = arith.mulf %312, %298 : vector<2x32xf32>
    %314 = vector.extract_strided_slice %309 {offsets = [0, 0], sizes = [2, 32], strides = [1, 1]} : vector<2x128xf32> to vector<2x32xf32>
    %315 = arith.mulf %314, %311 : vector<2x32xf32>
    %316 = arith.addf %313, %315 : vector<2x32xf32>
    %317 = vector.extract_strided_slice %309 {offsets = [0, 96], sizes = [2, 32], strides = [1, 1]} : vector<2x128xf32> to vector<2x32xf32>
    %318 = math.tanh %316 : vector<2x32xf32>
    %319 = arith.mulf %317, %318 : vector<2x32xf32>
    %320 = vector.extract_strided_slice %190 {offsets = [14, 0], sizes = [2, 128], strides = [1, 1]} : vector<16x256xf32> to vector<2x128xf32>
    %cst_74 = arith.constant dense<0.000000e+00> : vector<2x128xf32>
    %321 = tpu.matmul %319, %191, %cst_74 {dimension_numbers = #tpu.dot_dimension_numbers<[1], [0], [0], [1], [0, 0, 1, 1], [], []>} : vector<2x32xf32>, vector<32x128xf32>, vector<2x128xf32> -> vector<2x128xf32>
    %322 = arith.addf %320, %321 : vector<2x128xf32>
    %323 = arith.negf %322 : vector<2x128xf32>
    %324 = math.exp %323 : vector<2x128xf32>
    %cst_75 = arith.constant 1.000000e+00 : f32
    %325 = vector.broadcast %cst_75 : f32 to vector<2x128xf32>
    %326 = arith.addf %325, %324 : vector<2x128xf32>
    %327 = arith.divf %325, %326 : vector<2x128xf32>
    %328 = vector.extract_strided_slice %322 {offsets = [0, 64], sizes = [2, 32], strides = [1, 1]} : vector<2x128xf32> to vector<2x32xf32>
    %329 = math.tanh %328 : vector<2x32xf32>
    %330 = vector.extract_strided_slice %327 {offsets = [0, 32], sizes = [2, 32], strides = [1, 1]} : vector<2x128xf32> to vector<2x32xf32>
    %331 = arith.mulf %330, %316 : vector<2x32xf32>
    %332 = vector.extract_strided_slice %327 {offsets = [0, 0], sizes = [2, 32], strides = [1, 1]} : vector<2x128xf32> to vector<2x32xf32>
    %333 = arith.mulf %332, %329 : vector<2x32xf32>
    %334 = arith.addf %331, %333 : vector<2x32xf32>
    %335 = vector.extract_strided_slice %327 {offsets = [0, 96], sizes = [2, 32], strides = [1, 1]} : vector<2x128xf32> to vector<2x32xf32>
    %336 = math.tanh %334 : vector<2x32xf32>
    %337 = arith.mulf %335, %336 : vector<2x32xf32>
    %338 = vector.extract_strided_slice %190 {offsets = [14, 128], sizes = [2, 128], strides = [1, 1]} : vector<16x256xf32> to vector<2x128xf32>
    %339 = arith.negf %338 : vector<2x128xf32>
    %340 = math.exp %339 : vector<2x128xf32>
    %cst_76 = arith.constant 1.000000e+00 : f32
    %341 = vector.broadcast %cst_76 : f32 to vector<2x128xf32>
    %342 = arith.addf %341, %340 : vector<2x128xf32>
    %343 = arith.divf %341, %342 : vector<2x128xf32>
    %344 = vector.extract_strided_slice %343 {offsets = [0, 0], sizes = [2, 32], strides = [1, 1]} : vector<2x128xf32> to vector<2x32xf32>
    %345 = vector.extract_strided_slice %338 {offsets = [0, 64], sizes = [2, 32], strides = [1, 1]} : vector<2x128xf32> to vector<2x32xf32>
    %346 = math.tanh %345 : vector<2x32xf32>
    %347 = arith.mulf %344, %346 : vector<2x32xf32>
    %348 = vector.extract_strided_slice %343 {offsets = [0, 96], sizes = [2, 32], strides = [1, 1]} : vector<2x128xf32> to vector<2x32xf32>
    %349 = math.tanh %347 : vector<2x32xf32>
    %350 = arith.mulf %348, %349 : vector<2x32xf32>
    %c0_77 = arith.constant 0 : index
    %c0_78 = arith.constant 0 : index
    %351 = vector.load %arg7[%c0_77, %c0_78] : memref<64x10xf32, #tpu.memory_space<vmem>>, vector<32x10xf32>
    %cst_79 = arith.constant dense<0.000000e+00> : vector<2x10xf32>
    %352 = tpu.matmul %337, %351, %cst_79 {dimension_numbers = #tpu.dot_dimension_numbers<[1], [0], [0], [1], [0, 0, 1, 1], [], []>} : vector<2x32xf32>, vector<32x10xf32>, vector<2x10xf32> -> vector<2x10xf32>
    %c32_80 = arith.constant 32 : index
    %c0_81 = arith.constant 0 : index
    %353 = vector.load %arg7[%c32_80, %c0_81] : memref<64x10xf32, #tpu.memory_space<vmem>>, vector<32x10xf32>
    %cst_82 = arith.constant dense<0.000000e+00> : vector<2x10xf32>
    %354 = tpu.matmul %350, %353, %cst_82 {dimension_numbers = #tpu.dot_dimension_numbers<[1], [0], [0], [1], [0, 0, 1, 1], [], []>} : vector<2x32xf32>, vector<32x10xf32>, vector<2x10xf32> -> vector<2x10xf32>
    %355 = arith.addf %352, %354 : vector<2x10xf32>
    %c0_83 = arith.constant 0 : index
    %c0_84 = arith.constant 0 : index
    %356 = vector.load %arg8[%c0_83, %c0_84] : memref<1x10xf32, #tpu.memory_space<vmem>>, vector<1x10xf32>
    %357 = vector.broadcast %356 : vector<1x10xf32> to vector<2x10xf32>
    %358 = arith.addf %355, %357 : vector<2x10xf32>
    %c0_85 = arith.constant 0 : index
    %c0_86 = arith.constant 0 : index
    %359 = vector.load %arg9[%c0_85, %c0_86] : memref<2x10xf32, #tpu.memory_space<vmem>>, vector<2x10xf32>
    tpu.vector_store %arg9[%c0_85, %c0_86], %358 {strides = array<i32>} : memref<2x10xf32, #tpu.memory_space<vmem>>, vector<2x10xf32>,
    return
  }
}

</mosaic_0001>

<llo_original>
// kernel: tpu_custom_call.1
$region0: #{tpu_custom_call.1}
  #allocation0 [shape = 'u32[]', space=smem, size = 0x4, offset = 0x4, fixed_abs, tag = 'smem constant byte address 0x4 - core index']
  #allocation1 [shape = 'u32[144,128]{1,0:T(1,128)}', space=vmem, size = 0x12000, scoped, tag = 'internal scratch']
  #allocation2 [shape = 'f32[16,64]{1,0:T(8,128)}', space=vmem, size = 0x2000, scoped, tag = 'scratch operand']
  %s0 = inlined_call_operand.hbm [shape: f32[16,32], index: 0, kind: input, shape index: {}]
  %s1 = inlined_call_operand.vmem [shape: f32[32,256], index: 1, kind: input, shape index: {}]
  %s2 = inlined_call_operand.vmem [shape: f32[1,256], index: 2, kind: input, shape index: {}]
  %s3 = inlined_call_operand.hbm [shape: f32[64,256], index: 3, kind: input, shape index: {}]
  %s4 = inlined_call_operand.hbm [shape: f32[64,256], index: 4, kind: input, shape index: {}]
  %s5 = inlined_call_operand.hbm [shape: f32[1,256], index: 5, kind: input, shape index: {}]
  %s6 = inlined_call_operand.vmem [shape: f32[32,128], index: 6, kind: input, shape index: {}]
  %s7 = inlined_call_operand.vmem [shape: f32[64,10], index: 7, kind: input, shape index: {}]
  %s8 = inlined_call_operand.vmem [shape: f32[1,10], index: 8, kind: input, shape index: {}]
  %s9 = inlined_call_operand.hbm [shape: f32[2,10], index: 9, kind: output, shape index: {}]
  %s10 = sld [smem:[#allocation0]]
  $region62: #{tpu_custom_call.1} parent=0
    _
  %s12 = ssub.s32 1, %s10
  %s13 = scalar_select 0, %s12, %s10
  $region1: #{tpu_custom_call.1} parent=0
    #allocation3 [shape = 'u8[8192]{0}', space=vmem, size = 0x2000, scoped, tag = 'input window, operand 0, single buffered']
    #allocation4 [shape = 's32[1]{0}', space=sflag, size = 0x4, scoped, tag = 'scoped memory for tpu_custom_call.1']
    #allocation5 [shape = 's32[1]{0}', space=sflag, size = 0x4, scoped, tag = 'scoped memory for tpu_custom_call.1']
    #allocation6 [shape = 'u8[65536]{0}', space=vmem, size = 0x10000, scoped, tag = 'input window, operand 3, single buffered']
    #allocation7 [shape = 's32[1]{0}', space=sflag, size = 0x4, scoped, tag = 'scoped memory for tpu_custom_call.1']
    #allocation8 [shape = 'u8[65536]{0}', space=vmem, size = 0x10000, scoped, tag = 'input window, operand 4, single buffered']
    #allocation9 [shape = 'u8[1024]{0}', space=vmem, size = 0x400, scoped, tag = 'input window, operand 5, single buffered']
    #allocation10 [shape = 's32[1]{0}', space=sflag, size = 0x4, scoped, tag = 'scoped memory for tpu_custom_call.1']
    #allocation11 [shape = 'u8[1024]{0}', space=vmem, size = 0x400, scoped, tag = 'output window, operand 0, single buffered']
    %14 = vsyncpa [#allocation4], 0
    %15 = vsyncpa [#allocation7], 0
    %16 = vsyncpa [#allocation10], 0
    %17 = vsyncpa [#allocation5], 0
    // Predicated region
    $region2: #{tpu_custom_call.1} parent=1 // pred_check
      _
    $region3: #{tpu_custom_call.1} parent=1 // pred_check_branch
      %19 = sbr.rel (0) target = $region5
    $region4: #{tpu_custom_call.1} parent=1 // pred_region
      %s21 = ssub.s32 256, 256
      %22 = vsyncadd [#allocation4], %s21
      %s23 = sshll.u32 [#allocation3], 4
      %s24 = int_to_ptr.vmem [resolvable:$true] %s23
      %29 = dma.hbm_to_vmem [thread:$0]  %s0, 256, %s24, [#allocation4], 128, 128, 8
    $region5: #{tpu_custom_call.1} parent=1 // pred_fallthru
      _
    // Predicated region
    $region6: #{tpu_custom_call.1} parent=1 // pred_check
      _
    $region7: #{tpu_custom_call.1} parent=1 // pred_check_branch
      %31 = sbr.rel (0) target = $region9
    $region8: #{tpu_custom_call.1} parent=1 // pred_region
      _
    $region9: #{tpu_custom_call.1} parent=1 // pred_fallthru
      _
    // Predicated region
    $region10: #{tpu_custom_call.1} parent=1 // pred_check
      _
    $region11: #{tpu_custom_call.1} parent=1 // pred_check_branch
      %33 = sbr.rel (0) target = $region13
    $region12: #{tpu_custom_call.1} parent=1 // pred_region
      _
    $region13: #{tpu_custom_call.1} parent=1 // pred_fallthru
      _
    // Predicated region
    $region14: #{tpu_custom_call.1} parent=1 // pred_check
      _
    $region15: #{tpu_custom_call.1} parent=1 // pred_check_branch
      %35 = sbr.rel (0) target = $region17
    $region16: #{tpu_custom_call.1} parent=1 // pred_region
      %s37 = ssub.s32 2048, 2048
      %38 = vsyncadd [#allocation7], %s37
      %s39 = sshll.u32 [#allocation6], 4
      %s40 = int_to_ptr.vmem [resolvable:$true] %s39
      %45 = dma.hbm_to_vmem [thread:$0]  %s3, 2048, %s40, [#allocation7], 256, 256, 16
    $region17: #{tpu_custom_call.1} parent=1 // pred_fallthru
      _
    // Predicated region
    $region18: #{tpu_custom_call.1} parent=1 // pred_check
      _
    $region19: #{tpu_custom_call.1} parent=1 // pred_check_branch
      %47 = sbr.rel (0) target = $region21
    $region20: #{tpu_custom_call.1} parent=1 // pred_region
      %s49 = ssub.s32 2048, 2048
      %50 = vsyncadd [#allocation7], %s49
      %s51 = sshll.u32 [#allocation8], 4
      %s52 = int_to_ptr.vmem [resolvable:$true] %s51
      %57 = dma.hbm_to_vmem [thread:$0]  %s4, 2048, %s52, [#allocation7], 256, 256, 16
    $region21: #{tpu_custom_call.1} parent=1 // pred_fallthru
      _
    // Predicated region
    $region22: #{tpu_custom_call.1} parent=1 // pred_check
      _
    $region23: #{tpu_custom_call.1} parent=1 // pred_check_branch
      %59 = sbr.rel (0) target = $region25
    $region24: #{tpu_custom_call.1} parent=1 // pred_region
      %s61 = ssub.s32 32, 32
      %62 = vsyncadd [#allocation10], %s61
      %s64 = sshll.u32 [#allocation9], 4
      %s65 = int_to_ptr.vmem [resolvable:$true] %s64
      %67 = dma.hbm_to_vmem [thread:$0]  %s5, 32, %s65, [#allocation10]
    $region25: #{tpu_custom_call.1} parent=1 // pred_fallthru
      _
    // Predicated region
    $region26: #{tpu_custom_call.1} parent=1 // pred_check
      _
    $region27: #{tpu_custom_call.1} parent=1 // pred_check_branch
      %69 = sbr.rel (0) target = $region29
    $region28: #{tpu_custom_call.1} parent=1 // pred_region
      _
    $region29: #{tpu_custom_call.1} parent=1 // pred_fallthru
      _
    // Predicated region
    $region30: #{tpu_custom_call.1} parent=1 // pred_check
      _
    $region31: #{tpu_custom_call.1} parent=1 // pred_check_branch
      %71 = sbr.rel (0) target = $region33
    $region32: #{tpu_custom_call.1} parent=1 // pred_region
      _
    $region33: #{tpu_custom_call.1} parent=1 // pred_fallthru
      _
    // Predicated region
    $region34: #{tpu_custom_call.1} parent=1 // pred_check
      _
    $region35: #{tpu_custom_call.1} parent=1 // pred_check_branch
      %73 = sbr.rel (0) target = $region37
    $region36: #{tpu_custom_call.1} parent=1 // pred_region
      _
    $region37: #{tpu_custom_call.1} parent=1 // pred_fallthru
      _
    // Predicated region
    $region38: #{tpu_custom_call.1} parent=1 // pred_check
      _
    $region39: #{tpu_custom_call.1} parent=1 // pred_check_branch
      %75 = sbr.rel (0) target = $region41
    $region40: #{tpu_custom_call.1} parent=1 // pred_region
      %76 = dma.done [#allocation4], 256
    $region41: #{tpu_custom_call.1} parent=1 // pred_fallthru
      _
    // Predicated region
    $region42: #{tpu_custom_call.1} parent=1 // pred_check
      _
    $region43: #{tpu_custom_call.1} parent=1 // pred_check_branch
      %78 = sbr.rel (0) target = $region45
    $region44: #{tpu_custom_call.1} parent=1 // pred_region
      %79 = dma.done [#allocation7], 2048
    $region45: #{tpu_custom_call.1} parent=1 // pred_fallthru
      _
    // Predicated region
    $region46: #{tpu_custom_call.1} parent=1 // pred_check
      _
    $region47: #{tpu_custom_call.1} parent=1 // pred_check_branch
      %81 = sbr.rel (0) target = $region49
    $region48: #{tpu_custom_call.1} parent=1 // pred_region
      %82 = dma.done [#allocation7], 2048
    $region49: #{tpu_custom_call.1} parent=1 // pred_fallthru
      _
    // Predicated region
    $region50: #{tpu_custom_call.1} parent=1 // pred_check
      _
    $region51: #{tpu_custom_call.1} parent=1 // pred_check_branch
      %84 = sbr.rel (0) target = $region53
    $region52: #{tpu_custom_call.1} parent=1 // pred_region
      %85 = dma.done [#allocation10], 32
    $region53: #{tpu_custom_call.1} parent=1 // pred_fallthru
      _
    %v86 = vld [vmem:[#allocation3] sm:$0xff]
    %v87 = vld [vmem:[#allocation3 + $0x8] sm:$0xff]
    %v88 = vld [vmem:[%s1] sm:$0xff]
    %v89 = vld [vmem:[%s1 + $0x8] sm:$0xff]
    %v90 = vld [vmem:[%s1 + $0x10] sm:$0xff]
    %v91 = vld [vmem:[%s1 + $0x18] sm:$0xff]
    %v92 = vld [vmem:[%s1 + $0x20] sm:$0xff]
    %v93 = vld [vmem:[%s1 + $0x28] sm:$0xff]
    %v94 = vld [vmem:[%s1 + $0x30] sm:$0xff]
    %v95 = vld [vmem:[%s1 + $0x38] sm:$0xff]
    %v96 = vld [vmem:[%s2] sm:$0x3]
    %v98 = vlaneseq
    %v99 = vshrl.u32 %v98, 7
    %v100 = vsub.s32 0, %v99
    %v101 = vrot.slane %v96, %v100
    %v102 = vlaneseq
    %v103 = vshrl.u32 %v102, 7
    %v104 = vsub.s32 1, %v103
    %v105 = vrot.slane %v96, %v104
    %vm108 = vcmask 261120
    %v110 = vsel %vm108, %v86, 0
    %v113 = vsel %vm108, %v87, 0
    %115 = vmatprep.subr.mxu0 %v89
    %116 = vmatpush1.msra.mxu0 %v88
    %117 = vmatprep.subr.mxu0 %v91
    %118 = vmatpush1.msra.mxu0 %v90
    %119 = vmatprep.subr.mxu0 %v93
    %120 = vmatpush1.msra.mxu0 %v92
    %121 = vmatprep.subr.mxu0 %v95
    %122 = vmatpush1.msra.mxu0 %v94
    %123 = vmatprep.subr.mxu0 0.0
    %124 = vmatpush1.msra.mxu0 0.0
    %125 = vmatprep.subr.mxu0 0.0
    %126 = vmatpush1.msra.mxu0 0.0
    %127 = vmatprep.subr.mxu0 0.0
    %128 = vmatpush1.msra.mxu0 0.0
    %129 = vmatprep.subr.mxu0 0.0
    %130 = vmatpush1.msra.mxu0 0.0
    %131 = vmatprep.subr.mxu0 0.0
    %132 = vmatpush1.msra.mxu0 0.0
    %133 = vmatprep.subr.mxu0 0.0
    %134 = vmatpush1.msra.mxu0 0.0
    %135 = vmatprep.subr.mxu0 0.0
    %136 = vmatpush1.msra.mxu0 0.0
    %137 = vmatprep.subr.mxu0 0.0
    %138 = vmatpush1.msra.mxu0 0.0
    %139 = vmatprep.subr.mxu0 0.0
    %140 = vmatpush1.msra.mxu0 0.0
    %141 = vmatprep.subr.mxu0 0.0
    %142 = vmatpush1.msra.mxu0 0.0
    %143 = vmatprep.subr.mxu0 0.0
    %144 = vmatpush1.msra.mxu0 0.0
    %145 = vmatprep.subr.mxu0 0.0
    %146 = vmatpush1.msra.mxu0 0.0
    %147 = vmatprep.subr.mxu0 0.0
    %148 = vmatpush1.msra.mxu0 0.0
    %149 = vmatprep.subr.mxu0 0.0
    %150 = vmatpush1.msra.mxu0 0.0
    %151 = vmatprep.subr.mxu0 0.0
    %152 = vmatpush1.msra.mxu0 0.0
    %153 = vmatprep.subr.mxu0 0.0
    %154 = vmatpush1.msra.mxu0 0.0
    %155 = vmatprep.subr.mxu0 0.0
    %156 = vmatpush1.msra.mxu0 0.0
    %157 = vmatprep.subr.mxu0 0.0
    %158 = vmatpush1.msra.mxu0 0.0
    %159 = vmatprep.subr.mxu0 0.0
    %160 = vmatpush1.msra.mxu0 0.0
    %161 = vmatprep.subr.mxu0 0.0
    %162 = vmatpush1.msra.mxu0 0.0
    %163 = vmatprep.subr.mxu0 0.0
    %164 = vmatpush1.msra.mxu0 0.0
    %165 = vmatprep.subr.mxu0 0.0
    %166 = vmatpush1.msra.mxu0 0.0
    %167 = vmatprep.subr.mxu0 0.0
    %168 = vmatpush1.msra.mxu0 0.0
    %169 = vmatprep.subr.mxu0 0.0
    %170 = vmatpush1.msra.mxu0 0.0
    %171 = vmatprep.subr.mxu0 0.0
    %172 = vmatpush1.msra.mxu0 0.0
    %173 = vmatprep.subr.mxu0 0.0
    %174 = vmatpush1.msra.mxu0 0.0
    %175 = vmatprep.subr.mxu0 0.0
    %176 = vmatpush1.msra.mxu0 0.0
    %177 = vmatprep.subr.mxu0 0.0
    %178 = vmatpush1.msra.mxu0 0.0
    %179 = vmatprep.mubr.f32.mxu0 0.0
    %180 = vmatmul.mubr.f32.gmra.mrb[0].mxu0 %v110
    %v181 = vpop.f32.mrb[0].mxu0
    %v182 = vadd.f32 %v101, %v181
    %v183 = vpop.f32.mrb[0].mxu0
    %v184 = vadd.f32 %v105, %v183
    %185 = vmatprep.mubr.f32.mxu0 0.0
    %186 = vmatmul.mubr.f32.gmra.mrb[0].mxu0 %v113
    %v187 = vpop.f32.mrb[0].mxu0
    %v188 = vadd.f32 %v101, %v187
    %v189 = vpop.f32.mrb[0].mxu0
    %v190 = vadd.f32 %v105, %v189
    %191 = vdwg.mxu0
    %v192 = vld [vmem:[#allocation6] sm:$0xff]
    %v193 = vld [vmem:[#allocation6 + $0x8] sm:$0xff]
    %v194 = vld [vmem:[#allocation6 + $0x10] sm:$0xff]
    %v195 = vld [vmem:[#allocation6 + $0x18] sm:$0xff]
    %v196 = vld [vmem:[#allocation6 + $0x20] sm:$0xff]
    %v197 = vld [vmem:[#allocation6 + $0x28] sm:$0xff]
    %v198 = vld [vmem:[#allocation6 + $0x30] sm:$0xff]
    %v199 = vld [vmem:[#allocation6 + $0x38] sm:$0xff]
    %v200 = vld [vmem:[#allocation6 + $0x40] sm:$0xff]
    %v201 = vld [vmem:[#allocation6 + $0x48] sm:$0xff]
    %v202 = vld [vmem:[#allocation6 + $0x50] sm:$0xff]
    %v203 = vld [vmem:[#allocation6 + $0x58] sm:$0xff]
    %v204 = vld [vmem:[#allocation6 + $0x60] sm:$0xff]
    %v205 = vld [vmem:[#allocation6 + $0x68] sm:$0xff]
    %v206 = vld [vmem:[#allocation6 + $0x70] sm:$0xff]
    %v207 = vld [vmem:[#allocation6 + $0x78] sm:$0xff]
    %vm208 = vcmask 523264
    %v210 = vsel %vm208, 0.0, 0
    %212 = vmatprep.subr.mxu0 %v193
    %213 = vmatpush1.msra.mxu0 %v192
    %214 = vmatprep.subr.mxu0 %v195
    %215 = vmatpush1.msra.mxu0 %v194
    %216 = vmatprep.subr.mxu0 %v197
    %217 = vmatpush1.msra.mxu0 %v196
    %218 = vmatprep.subr.mxu0 %v199
    %219 = vmatpush1.msra.mxu0 %v198
    %220 = vmatprep.subr.mxu0 %v201
    %221 = vmatpush1.msra.mxu0 %v200
    %222 = vmatprep.subr.mxu0 %v203
    %223 = vmatpush1.msra.mxu0 %v202
    %224 = vmatprep.subr.mxu0 %v205
    %225 = vmatpush1.msra.mxu0 %v204
    %226 = vmatprep.subr.mxu0 %v207
    %227 = vmatpush1.msra.mxu0 %v206
    %228 = vmatprep.subr.mxu0 0.0
    %229 = vmatpush1.msra.mxu0 0.0
    %230 = vmatprep.subr.mxu0 0.0
    %231 = vmatpush1.msra.mxu0 0.0
    %232 = vmatprep.subr.mxu0 0.0
    %233 = vmatpush1.msra.mxu0 0.0
    %234 = vmatprep.subr.mxu0 0.0
    %235 = vmatpush1.msra.mxu0 0.0
    %236 = vmatprep.subr.mxu0 0.0
    %237 = vmatpush1.msra.mxu0 0.0
    %238 = vmatprep.subr.mxu0 0.0
    %239 = vmatpush1.msra.mxu0 0.0
    %240 = vmatprep.subr.mxu0 0.0
    %241 = vmatpush1.msra.mxu0 0.0
    %242 = vmatprep.subr.mxu0 0.0
    %243 = vmatpush1.msra.mxu0 0.0
    %244 = vmatprep.subr.mxu0 0.0
    %245 = vmatpush1.msra.mxu0 0.0
    %246 = vmatprep.subr.mxu0 0.0
    %247 = vmatpush1.msra.mxu0 0.0
    %248 = vmatprep.subr.mxu0 0.0
    %249 = vmatpush1.msra.mxu0 0.0
    %250 = vmatprep.subr.mxu0 0.0
    %251 = vmatpush1.msra.mxu0 0.0
    %252 = vmatprep.subr.mxu0 0.0
    %253 = vmatpush1.msra.mxu0 0.0
    %254 = vmatprep.subr.mxu0 0.0
    %255 = vmatpush1.msra.mxu0 0.0
    %256 = vmatprep.subr.mxu0 0.0
    %257 = vmatpush1.msra.mxu0 0.0
    %258 = vmatprep.subr.mxu0 0.0
    %259 = vmatpush1.msra.mxu0 0.0
    %260 = vmatprep.subr.mxu0 0.0
    %261 = vmatpush1.msra.mxu0 0.0
    %262 = vmatprep.subr.mxu0 0.0
    %263 = vmatpush1.msra.mxu0 0.0
    %264 = vmatprep.subr.mxu0 0.0
    %265 = vmatpush1.msra.mxu0 0.0
    %266 = vmatprep.subr.mxu0 0.0
    %267 = vmatpush1.msra.mxu0 0.0
    %268 = vmatprep.subr.mxu0 0.0
    %269 = vmatpush1.msra.mxu0 0.0
    %270 = vmatprep.subr.mxu0 0.0
    %271 = vmatpush1.msra.mxu0 0.0
    %272 = vmatprep.subr.mxu0 0.0
    %273 = vmatpush1.msra.mxu0 0.0
    %274 = vmatprep.subr.mxu0 0.0
    %275 = vmatpush1.msra.mxu0 0.0
    %276 = vmatprep.mubr.f32.mxu0 0.0
    %277 = vmatmul.mubr.f32.gmra.mrb[0].mxu0 %v210
    %v278 = vpop.f32.mrb[0].mxu0
    %v279 = vadd.f32 0.0, %v278
    %v280 = vpop.f32.mrb[0].mxu0
    %v281 = vadd.f32 0.0, %v280
    %282 = vdwg.mxu0
    %v283 = vadd.f32 %v182, %v279
    %v284 = vadd.f32 %v184, %v281
    %v285 = vxor.u32 %v283, 2147483648
    %v286 = vxor.u32 %v284, 2147483648
    %v287 = vmul.f32 %v285, 1.442695
    %v288 = vpow.pop %v287
    %v289 = vmul.f32 %v286, 1.442695
    %v290 = vpow.pop %v289
    %v291 = vadd.f32 %v288, 1.0
    %v292 = vadd.f32 %v290, 1.0
    %v293 = vrcp.pop %v291
    %v294 = vmul.f32 1.0, %v293
    %v295 = vrcp.pop %v292
    %v296 = vmul.f32 1.0, %v295
    %v297 = vtanh.pop %v284
    %v298 = vmul.f32 %v294, 0.0
    %v299 = vmul.f32 %v294, %v297
    %301 = vrot.lane.b32.xlu0 %v299, 64
    %v302 = vpop.permute.xlu0 %301
    %v304 = vadd.f32 %v298, %v302
    %v305 = vtanh.pop %v304
    %v306 = vmul.f32 %v296, %v305
    %308 = vrot.lane.b32.xlu0 %v306, 64
    %v309 = vpop.permute.xlu0 %308
    %vm311 = vcmask 254976
    %312 = vst.msk [vmem:[#allocation2] sm:$0x3] %vm311, %v309
    %vm313 = vcmask 517376
    %314 = vst.msk [vmem:[#allocation2 + $0xe] sm:$0x3] %vm313, %v309
    %v315 = vsel %vm208, %v309, 0
    %317 = vmatprep.subr.mxu0 %v193
    %318 = vmatpush1.msra.mxu0 %v192
    %319 = vmatprep.subr.mxu0 %v195
    %320 = vmatpush1.msra.mxu0 %v194
    %321 = vmatprep.subr.mxu0 %v197
    %322 = vmatpush1.msra.mxu0 %v196
    %323 = vmatprep.subr.mxu0 %v199
    %324 = vmatpush1.msra.mxu0 %v198
    %325 = vmatprep.subr.mxu0 %v201
    %326 = vmatpush1.msra.mxu0 %v200
    %327 = vmatprep.subr.mxu0 %v203
    %328 = vmatpush1.msra.mxu0 %v202
    %329 = vmatprep.subr.mxu0 %v205
    %330 = vmatpush1.msra.mxu0 %v204
    %331 = vmatprep.subr.mxu0 %v207
    %332 = vmatpush1.msra.mxu0 %v206
    %333 = vmatprep.subr.mxu0 0.0
    %334 = vmatpush1.msra.mxu0 0.0
    %335 = vmatprep.subr.mxu0 0.0
    %336 = vmatpush1.msra.mxu0 0.0
    %337 = vmatprep.subr.mxu0 0.0
    %338 = vmatpush1.msra.mxu0 0.0
    %339 = vmatprep.subr.mxu0 0.0
    %340 = vmatpush1.msra.mxu0 0.0
    %341 = vmatprep.subr.mxu0 0.0
    %342 = vmatpush1.msra.mxu0 0.0
    %343 = vmatprep.subr.mxu0 0.0
    %344 = vmatpush1.msra.mxu0 0.0
    %345 = vmatprep.subr.mxu0 0.0
    %346 = vmatpush1.msra.mxu0 0.0
    %347 = vmatprep.subr.mxu0 0.0
    %348 = vmatpush1.msra.mxu0 0.0
    %349 = vmatprep.subr.mxu0 0.0
    %350 = vmatpush1.msra.mxu0 0.0
    %351 = vmatprep.subr.mxu0 0.0
    %352 = vmatpush1.msra.mxu0 0.0
    %353 = vmatprep.subr.mxu0 0.0
    %354 = vmatpush1.msra.mxu0 0.0
    %355 = vmatprep.subr.mxu0 0.0
    %356 = vmatpush1.msra.mxu0 0.0
    %357 = vmatprep.subr.mxu0 0.0
    %358 = vmatpush1.msra.mxu0 0.0
    %359 = vmatprep.subr.mxu0 0.0
    %360 = vmatpush1.msra.mxu0 0.0
    %361 = vmatprep.subr.mxu0 0.0
    %362 = vmatpush1.msra.mxu0 0.0
    %363 = vmatprep.subr.mxu0 0.0
    %364 = vmatpush1.msra.mxu0 0.0
    %365 = vmatprep.subr.mxu0 0.0
    %366 = vmatpush1.msra.mxu0 0.0
    %367 = vmatprep.subr.mxu0 0.0
    %368 = vmatpush1.msra.mxu0 0.0
    %369 = vmatprep.subr.mxu0 0.0
    %370 = vmatpush1.msra.mxu0 0.0
    %371 = vmatprep.subr.mxu0 0.0
    %372 = vmatpush1.msra.mxu0 0.0
    %373 = vmatprep.subr.mxu0 0.0
    %374 = vmatpush1.msra.mxu0 0.0
    %375 = vmatprep.subr.mxu0 0.0
    %376 = vmatpush1.msra.mxu0 0.0
    %377 = vmatprep.subr.mxu0 0.0
    %378 = vmatpush1.msra.mxu0 0.0
    %379 = vmatprep.subr.mxu0 0.0
    %380 = vmatpush1.msra.mxu0 0.0
    %381 = vmatprep.mubr.f32.mxu0 0.0
    %382 = vmatmul.mubr.f32.gmra.mrb[0].mxu0 %v315
    %v383 = vpop.f32.mrb[0].mxu0
    %v384 = vadd.f32 0.0, %v383
    %v385 = vpop.f32.mrb[0].mxu0
    %v386 = vadd.f32 0.0, %v385
    %387 = vdwg.mxu0
    %v390 = vrot.slane %v384, 6
    %v391 = vrot.slane %v386, 6
    %v394 = vadd.f32 %v182, %v390
    %v395 = vadd.f32 %v184, %v391
    %v396 = vxor.u32 %v394, 2147483648
    %v397 = vxor.u32 %v395, 2147483648
    %v398 = vmul.f32 %v396, 1.442695
    %v399 = vpow.pop %v398
    %v400 = vmul.f32 %v397, 1.442695
    %v401 = vpow.pop %v400
    %v402 = vadd.f32 %v399, 1.0
    %v403 = vadd.f32 %v401, 1.0
    %v404 = vrcp.pop %v402
    %v405 = vmul.f32 1.0, %v404
    %v406 = vrcp.pop %v403
    %v407 = vmul.f32 1.0, %v406
    %v408 = vtanh.pop %v395
    %v410 = vrot.slane %v304, 6
    %v412 = vmul.f32 %v405, %v410
    %v413 = vmul.f32 %v405, %v408
    %415 = vrot.lane.b32.xlu0 %v413, 64
    %v416 = vpop.permute.xlu0 %415
    %v418 = vadd.f32 %v412, %v416
    %v419 = vtanh.pop %v418
    %v420 = vmul.f32 %v407, %v419
    %422 = vrot.lane.b32.xlu0 %v420, 64
    %v423 = vpop.permute.xlu0 %422
    %vm425 = vcmask 257026
    %426 = vst.msk [vmem:[#allocation2] sm:$0xc] %vm425, %v423
    %vm427 = vcmask 519426
    %428 = vst.msk [vmem:[#allocation2 + $0xa] sm:$0xc] %vm427, %v423
    %v429 = vrot.slane %v420, 2
    %430 = vrot.lane.b32.xlu0 %v429, 64
    %v431 = vpop.permute.xlu0 %430
    %v432 = vsel %vm208, %v431, 0
    %434 = vmatprep.subr.mxu0 %v193
    %435 = vmatpush1.msra.mxu0 %v192
    %436 = vmatprep.subr.mxu0 %v195
    %437 = vmatpush1.msra.mxu0 %v194
    %438 = vmatprep.subr.mxu0 %v197
    %439 = vmatpush1.msra.mxu0 %v196
    %440 = vmatprep.subr.mxu0 %v199
    %441 = vmatpush1.msra.mxu0 %v198
    %442 = vmatprep.subr.mxu0 %v201
    %443 = vmatpush1.msra.mxu0 %v200
    %444 = vmatprep.subr.mxu0 %v203
    %445 = vmatpush1.msra.mxu0 %v202
    %446 = vmatprep.subr.mxu0 %v205
    %447 = vmatpush1.msra.mxu0 %v204
    %448 = vmatprep.subr.mxu0 %v207
    %449 = vmatpush1.msra.mxu0 %v206
    %450 = vmatprep.subr.mxu0 0.0
    %451 = vmatpush1.msra.mxu0 0.0
    %452 = vmatprep.subr.mxu0 0.0
    %453 = vmatpush1.msra.mxu0 0.0
    %454 = vmatprep.subr.mxu0 0.0
    %455 = vmatpush1.msra.mxu0 0.0
    %456 = vmatprep.subr.mxu0 0.0
    %457 = vmatpush1.msra.mxu0 0.0
    %458 = vmatprep.subr.mxu0 0.0
    %459 = vmatpush1.msra.mxu0 0.0
    %460 = vmatprep.subr.mxu0 0.0
    %461 = vmatpush1.msra.mxu0 0.0
    %462 = vmatprep.subr.mxu0 0.0
    %463 = vmatpush1.msra.mxu0 0.0
    %464 = vmatprep.subr.mxu0 0.0
    %465 = vmatpush1.msra.mxu0 0.0
    %466 = vmatprep.subr.mxu0 0.0
    %467 = vmatpush1.msra.mxu0 0.0
    %468 = vmatprep.subr.mxu0 0.0
    %469 = vmatpush1.msra.mxu0 0.0
    %470 = vmatprep.subr.mxu0 0.0
    %471 = vmatpush1.msra.mxu0 0.0
    %472 = vmatprep.subr.mxu0 0.0
    %473 = vmatpush1.msra.mxu0 0.0
    %474 = vmatprep.subr.mxu0 0.0
    %475 = vmatpush1.msra.mxu0 0.0
    %476 = vmatprep.subr.mxu0 0.0
    %477 = vmatpush1.msra.mxu0 0.0
    %478 = vmatprep.subr.mxu0 0.0
    %479 = vmatpush1.msra.mxu0 0.0
    %480 = vmatprep.subr.mxu0 0.0
    %481 = vmatpush1.msra.mxu0 0.0
    %482 = vmatprep.subr.mxu0 0.0
    %483 = vmatpush1.msra.mxu0 0.0
    %484 = vmatprep.subr.mxu0 0.0
    %485 = vmatpush1.msra.mxu0 0.0
    %486 = vmatprep.subr.mxu0 0.0
    %487 = vmatpush1.msra.mxu0 0.0
    %488 = vmatprep.subr.mxu0 0.0
    %489 = vmatpush1.msra.mxu0 0.0
    %490 = vmatprep.subr.mxu0 0.0
    %491 = vmatpush1.msra.mxu0 0.0
    %492 = vmatprep.subr.mxu0 0.0
    %493 = vmatpush1.msra.mxu0 0.0
    %494 = vmatprep.subr.mxu0 0.0
    %495 = vmatpush1.msra.mxu0 0.0
    %496 = vmatprep.subr.mxu0 0.0
    %497 = vmatpush1.msra.mxu0 0.0
    %498 = vmatprep.mubr.f32.mxu0 0.0
    %499 = vmatmul.mubr.f32.gmra.mrb[0].mxu0 %v432
    %v500 = vpop.f32.mrb[0].mxu0
    %v501 = vadd.f32 0.0, %v500
    %v502 = vpop.f32.mrb[0].mxu0
    %v503 = vadd.f32 0.0, %v502
    %504 = vdwg.mxu0
    %v507 = vrot.slane %v501, 4
    %v508 = vrot.slane %v503, 4
    %v511 = vadd.f32 %v182, %v507
    %v512 = vadd.f32 %v184, %v508
    %v513 = vxor.u32 %v511, 2147483648
    %v514 = vxor.u32 %v512, 2147483648
    %v515 = vmul.f32 %v513, 1.442695
    %v516 = vpow.pop %v515
    %v517 = vmul.f32 %v514, 1.442695
    %v518 = vpow.pop %v517
    %v519 = vadd.f32 %v516, 1.0
    %v520 = vadd.f32 %v518, 1.0
    %v521 = vrcp.pop %v519
    %v522 = vmul.f32 1.0, %v521
    %v523 = vrcp.pop %v520
    %v524 = vmul.f32 1.0, %v523
    %v525 = vtanh.pop %v512
    %v527 = vrot.slane %v418, 6
    %v529 = vmul.f32 %v522, %v527
    %v530 = vmul.f32 %v522, %v525
    %532 = vrot.lane.b32.xlu0 %v530, 64
    %v533 = vpop.permute.xlu0 %532
    %v535 = vadd.f32 %v529, %v533
    %v536 = vtanh.pop %v535
    %v537 = vmul.f32 %v524, %v536
    %539 = vrot.lane.b32.xlu0 %v537, 64
    %v540 = vpop.permute.xlu0 %539
    %vm542 = vcmask 259076
    %543 = vst.msk [vmem:[#allocation2] sm:$0x30] %vm542, %v540
    %vm544 = vcmask 521476
    %545 = vst.msk [vmem:[#allocation2 + $0x6] sm:$0x30] %vm544, %v540
    %v546 = vrot.slane %v537, 4
    %547 = vrot.lane.b32.xlu0 %v546, 64
    %v548 = vpop.permute.xlu0 %547
    %v549 = vsel %vm208, %v548, 0
    %551 = vmatprep.subr.mxu0 %v193
    %552 = vmatpush1.msra.mxu0 %v192
    %553 = vmatprep.subr.mxu0 %v195
    %554 = vmatpush1.msra.mxu0 %v194
    %555 = vmatprep.subr.mxu0 %v197
    %556 = vmatpush1.msra.mxu0 %v196
    %557 = vmatprep.subr.mxu0 %v199
    %558 = vmatpush1.msra.mxu0 %v198
    %559 = vmatprep.subr.mxu0 %v201
    %560 = vmatpush1.msra.mxu0 %v200
    %561 = vmatprep.subr.mxu0 %v203
    %562 = vmatpush1.msra.mxu0 %v202
    %563 = vmatprep.subr.mxu0 %v205
    %564 = vmatpush1.msra.mxu0 %v204
    %565 = vmatprep.subr.mxu0 %v207
    %566 = vmatpush1.msra.mxu0 %v206
    %567 = vmatprep.subr.mxu0 0.0
    %568 = vmatpush1.msra.mxu0 0.0
    %569 = vmatprep.subr.mxu0 0.0
    %570 = vmatpush1.msra.mxu0 0.0
    %571 = vmatprep.subr.mxu0 0.0
    %572 = vmatpush1.msra.mxu0 0.0
    %573 = vmatprep.subr.mxu0 0.0
    %574 = vmatpush1.msra.mxu0 0.0
    %575 = vmatprep.subr.mxu0 0.0
    %576 = vmatpush1.msra.mxu0 0.0
    %577 = vmatprep.subr.mxu0 0.0
    %578 = vmatpush1.msra.mxu0 0.0
    %579 = vmatprep.subr.mxu0 0.0
    %580 = vmatpush1.msra.mxu0 0.0
    %581 = vmatprep.subr.mxu0 0.0
    %582 = vmatpush1.msra.mxu0 0.0
    %583 = vmatprep.subr.mxu0 0.0
    %584 = vmatpush1.msra.mxu0 0.0
    %585 = vmatprep.subr.mxu0 0.0
    %586 = vmatpush1.msra.mxu0 0.0
    %587 = vmatprep.subr.mxu0 0.0
    %588 = vmatpush1.msra.mxu0 0.0
    %589 = vmatprep.subr.mxu0 0.0
    %590 = vmatpush1.msra.mxu0 0.0
    %591 = vmatprep.subr.mxu0 0.0
    %592 = vmatpush1.msra.mxu0 0.0
    %593 = vmatprep.subr.mxu0 0.0
    %594 = vmatpush1.msra.mxu0 0.0
    %595 = vmatprep.subr.mxu0 0.0
    %596 = vmatpush1.msra.mxu0 0.0
    %597 = vmatprep.subr.mxu0 0.0
    %598 = vmatpush1.msra.mxu0 0.0
    %599 = vmatprep.subr.mxu0 0.0
    %600 = vmatpush1.msra.mxu0 0.0
    %601 = vmatprep.subr.mxu0 0.0
    %602 = vmatpush1.msra.mxu0 0.0
    %603 = vmatprep.subr.mxu0 0.0
    %604 = vmatpush1.msra.mxu0 0.0
    %605 = vmatprep.subr.mxu0 0.0
    %606 = vmatpush1.msra.mxu0 0.0
    %607 = vmatprep.subr.mxu0 0.0
    %608 = vmatpush1.msra.mxu0 0.0
    %609 = vmatprep.subr.mxu0 0.0
    %610 = vmatpush1.msra.mxu0 0.0
    %611 = vmatprep.subr.mxu0 0.0
    %612 = vmatpush1.msra.mxu0 0.0
    %613 = vmatprep.subr.mxu0 0.0
    %614 = vmatpush1.msra.mxu0 0.0
    %615 = vmatprep.mubr.f32.mxu0 0.0
    %616 = vmatmul.mubr.f32.gmra.mrb[0].mxu0 %v549
    %v617 = vpop.f32.mrb[0].mxu0
    %v618 = vadd.f32 0.0, %v617
    %v619 = vpop.f32.mrb[0].mxu0
    %v620 = vadd.f32 0.0, %v619
    %621 = vdwg.mxu0
    %v624 = vrot.slane %v618, 2
    %v625 = vrot.slane %v620, 2
    %v628 = vadd.f32 %v182, %v624
    %v629 = vadd.f32 %v184, %v625
    %v630 = vxor.u32 %v628, 2147483648
    %v631 = vxor.u32 %v629, 2147483648
    %v632 = vmul.f32 %v630, 1.442695
    %v633 = vpow.pop %v632
    %v634 = vmul.f32 %v631, 1.442695
    %v635 = vpow.pop %v634
    %v636 = vadd.f32 %v633, 1.0
    %v637 = vadd.f32 %v635, 1.0
    %v638 = vrcp.pop %v636
    %v639 = vmul.f32 1.0, %v638
    %v640 = vrcp.pop %v637
    %v641 = vmul.f32 1.0, %v640
    %v642 = vtanh.pop %v629
    %v644 = vrot.slane %v535, 6
    %v646 = vmul.f32 %v639, %v644
    %v647 = vmul.f32 %v639, %v642
    %649 = vrot.lane.b32.xlu0 %v647, 64
    %v650 = vpop.permute.xlu0 %649
    %v652 = vadd.f32 %v646, %v650
    %v653 = vtanh.pop %v652
    %v654 = vmul.f32 %v641, %v653
    %656 = vrot.lane.b32.xlu0 %v654, 64
    %v657 = vpop.permute.xlu0 %656
    %vm659 = vcmask 261126
    %660 = vst.msk [vmem:[#allocation2] sm:$0xc0] %vm659, %v657
    %vm661 = vcmask 523526
    %662 = vst.msk [vmem:[#allocation2 + $0x2] sm:$0xc0] %vm661, %v657
    %v663 = vrot.slane %v654, 6
    %664 = vrot.lane.b32.xlu0 %v663, 64
    %v665 = vpop.permute.xlu0 %664
    %v666 = vsel %vm208, %v665, 0
    %668 = vmatprep.subr.mxu0 %v193
    %669 = vmatpush1.msra.mxu0 %v192
    %670 = vmatprep.subr.mxu0 %v195
    %671 = vmatpush1.msra.mxu0 %v194
    %672 = vmatprep.subr.mxu0 %v197
    %673 = vmatpush1.msra.mxu0 %v196
    %674 = vmatprep.subr.mxu0 %v199
    %675 = vmatpush1.msra.mxu0 %v198
    %676 = vmatprep.subr.mxu0 %v201
    %677 = vmatpush1.msra.mxu0 %v200
    %678 = vmatprep.subr.mxu0 %v203
    %679 = vmatpush1.msra.mxu0 %v202
    %680 = vmatprep.subr.mxu0 %v205
    %681 = vmatpush1.msra.mxu0 %v204
    %682 = vmatprep.subr.mxu0 %v207
    %683 = vmatpush1.msra.mxu0 %v206
    %684 = vmatprep.subr.mxu0 0.0
    %685 = vmatpush1.msra.mxu0 0.0
    %686 = vmatprep.subr.mxu0 0.0
    %687 = vmatpush1.msra.mxu0 0.0
    %688 = vmatprep.subr.mxu0 0.0
    %689 = vmatpush1.msra.mxu0 0.0
    %690 = vmatprep.subr.mxu0 0.0
    %691 = vmatpush1.msra.mxu0 0.0
    %692 = vmatprep.subr.mxu0 0.0
    %693 = vmatpush1.msra.mxu0 0.0
    %694 = vmatprep.subr.mxu0 0.0
    %695 = vmatpush1.msra.mxu0 0.0
    %696 = vmatprep.subr.mxu0 0.0
    %697 = vmatpush1.msra.mxu0 0.0
    %698 = vmatprep.subr.mxu0 0.0
    %699 = vmatpush1.msra.mxu0 0.0
    %700 = vmatprep.subr.mxu0 0.0
    %701 = vmatpush1.msra.mxu0 0.0
    %702 = vmatprep.subr.mxu0 0.0
    %703 = vmatpush1.msra.mxu0 0.0
    %704 = vmatprep.subr.mxu0 0.0
    %705 = vmatpush1.msra.mxu0 0.0
    %706 = vmatprep.subr.mxu0 0.0
    %707 = vmatpush1.msra.mxu0 0.0
    %708 = vmatprep.subr.mxu0 0.0
    %709 = vmatpush1.msra.mxu0 0.0
    %710 = vmatprep.subr.mxu0 0.0
    %711 = vmatpush1.msra.mxu0 0.0
    %712 = vmatprep.subr.mxu0 0.0
    %713 = vmatpush1.msra.mxu0 0.0
    %714 = vmatprep.subr.mxu0 0.0
    %715 = vmatpush1.msra.mxu0 0.0
    %716 = vmatprep.subr.mxu0 0.0
    %717 = vmatpush1.msra.mxu0 0.0
    %718 = vmatprep.subr.mxu0 0.0
    %719 = vmatpush1.msra.mxu0 0.0
    %720 = vmatprep.subr.mxu0 0.0
    %721 = vmatpush1.msra.mxu0 0.0
    %722 = vmatprep.subr.mxu0 0.0
    %723 = vmatpush1.msra.mxu0 0.0
    %724 = vmatprep.subr.mxu0 0.0
    %725 = vmatpush1.msra.mxu0 0.0
    %726 = vmatprep.subr.mxu0 0.0
    %727 = vmatpush1.msra.mxu0 0.0
    %728 = vmatprep.subr.mxu0 0.0
    %729 = vmatpush1.msra.mxu0 0.0
    %730 = vmatprep.subr.mxu0 0.0
    %731 = vmatpush1.msra.mxu0 0.0
    %732 = vmatprep.mubr.f32.mxu0 0.0
    %733 = vmatmul.mubr.f32.gmra.mrb[0].mxu0 %v666
    %v734 = vpop.f32.mrb[0].mxu0
    %v735 = vadd.f32 0.0, %v734
    %v736 = vpop.f32.mrb[0].mxu0
    %v737 = vadd.f32 0.0, %v736
    %738 = vdwg.mxu0
    %v739 = vadd.f32 %v188, %v735
    %v740 = vadd.f32 %v190, %v737
    %v741 = vxor.u32 %v739, 2147483648
    %v742 = vxor.u32 %v740, 2147483648
    %v743 = vmul.f32 %v741, 1.442695
    %v744 = vpow.pop %v743
    %v745 = vmul.f32 %v742, 1.442695
    %v746 = vpow.pop %v745
    %v747 = vadd.f32 %v744, 1.0
    %v748 = vadd.f32 %v746, 1.0
    %v749 = vrcp.pop %v747
    %v750 = vmul.f32 1.0, %v749
    %v751 = vrcp.pop %v748
    %v752 = vmul.f32 1.0, %v751
    %v753 = vtanh.pop %v740
    %v755 = vrot.slane %v652, 6
    %v757 = vmul.f32 %v750, %v755
    %v758 = vmul.f32 %v750, %v753
    %760 = vrot.lane.b32.xlu0 %v758, 64
    %v761 = vpop.permute.xlu0 %760
    %v763 = vadd.f32 %v757, %v761
    %v764 = vtanh.pop %v763
    %v765 = vmul.f32 %v752, %v764
    %767 = vrot.lane.b32.xlu0 %v765, 64
    %v768 = vpop.permute.xlu0 %767
    %770 = vst.msk [vmem:[#allocation2 + $0x8] sm:$0x3] %vm311, %v768
    %771 = vst.msk [vmem:[#allocation2 + $0x6] sm:$0x3] %vm313, %v768
    %v772 = vsel %vm208, %v768, 0
    %774 = vmatprep.subr.mxu0 %v193
    %775 = vmatpush1.msra.mxu0 %v192
    %776 = vmatprep.subr.mxu0 %v195
    %777 = vmatpush1.msra.mxu0 %v194
    %778 = vmatprep.subr.mxu0 %v197
    %779 = vmatpush1.msra.mxu0 %v196
    %780 = vmatprep.subr.mxu0 %v199
    %781 = vmatpush1.msra.mxu0 %v198
    %782 = vmatprep.subr.mxu0 %v201
    %783 = vmatpush1.msra.mxu0 %v200
    %784 = vmatprep.subr.mxu0 %v203
    %785 = vmatpush1.msra.mxu0 %v202
    %786 = vmatprep.subr.mxu0 %v205
    %787 = vmatpush1.msra.mxu0 %v204
    %788 = vmatprep.subr.mxu0 %v207
    %789 = vmatpush1.msra.mxu0 %v206
    %790 = vmatprep.subr.mxu0 0.0
    %791 = vmatpush1.msra.mxu0 0.0
    %792 = vmatprep.subr.mxu0 0.0
    %793 = vmatpush1.msra.mxu0 0.0
    %794 = vmatprep.subr.mxu0 0.0
    %795 = vmatpush1.msra.mxu0 0.0
    %796 = vmatprep.subr.mxu0 0.0
    %797 = vmatpush1.msra.mxu0 0.0
    %798 = vmatprep.subr.mxu0 0.0
    %799 = vmatpush1.msra.mxu0 0.0
    %800 = vmatprep.subr.mxu0 0.0
    %801 = vmatpush1.msra.mxu0 0.0
    %802 = vmatprep.subr.mxu0 0.0
    %803 = vmatpush1.msra.mxu0 0.0
    %804 = vmatprep.subr.mxu0 0.0
    %805 = vmatpush1.msra.mxu0 0.0
    %806 = vmatprep.subr.mxu0 0.0
    %807 = vmatpush1.msra.mxu0 0.0
    %808 = vmatprep.subr.mxu0 0.0
    %809 = vmatpush1.msra.mxu0 0.0
    %810 = vmatprep.subr.mxu0 0.0
    %811 = vmatpush1.msra.mxu0 0.0
    %812 = vmatprep.subr.mxu0 0.0
    %813 = vmatpush1.msra.mxu0 0.0
    %814 = vmatprep.subr.mxu0 0.0
    %815 = vmatpush1.msra.mxu0 0.0
    %816 = vmatprep.subr.mxu0 0.0
    %817 = vmatpush1.msra.mxu0 0.0
    %818 = vmatprep.subr.mxu0 0.0
    %819 = vmatpush1.msra.mxu0 0.0
    %820 = vmatprep.subr.mxu0 0.0
    %821 = vmatpush1.msra.mxu0 0.0
    %822 = vmatprep.subr.mxu0 0.0
    %823 = vmatpush1.msra.mxu0 0.0
    %824 = vmatprep.subr.mxu0 0.0
    %825 = vmatpush1.msra.mxu0 0.0
    %826 = vmatprep.subr.mxu0 0.0
    %827 = vmatpush1.msra.mxu0 0.0
    %828 = vmatprep.subr.mxu0 0.0
    %829 = vmatpush1.msra.mxu0 0.0
    %830 = vmatprep.subr.mxu0 0.0
    %831 = vmatpush1.msra.mxu0 0.0
    %832 = vmatprep.subr.mxu0 0.0
    %833 = vmatpush1.msra.mxu0 0.0
    %834 = vmatprep.subr.mxu0 0.0
    %835 = vmatpush1.msra.mxu0 0.0
    %836 = vmatprep.subr.mxu0 0.0
    %837 = vmatpush1.msra.mxu0 0.0
    %838 = vmatprep.mubr.f32.mxu0 0.0
    %839 = vmatmul.mubr.f32.gmra.mrb[0].mxu0 %v772
    %v840 = vpop.f32.mrb[0].mxu0
    %v841 = vadd.f32 0.0, %v840
    %v842 = vpop.f32.mrb[0].mxu0
    %v843 = vadd.f32 0.0, %v842
    %844 = vdwg.mxu0
    %v847 = vrot.slane %v841, 6
    %v848 = vrot.slane %v843, 6
    %v851 = vadd.f32 %v188, %v847
    %v852 = vadd.f32 %v190, %v848
    %v853 = vxor.u32 %v851, 2147483648
    %v854 = vxor.u32 %v852, 2147483648
    %v855 = vmul.f32 %v853, 1.442695
    %v856 = vpow.pop %v855
    %v857 = vmul.f32 %v854, 1.442695
    %v858 = vpow.pop %v857
    %v859 = vadd.f32 %v856, 1.0
    %v860 = vadd.f32 %v858, 1.0
    %v861 = vrcp.pop %v859
    %v862 = vmul.f32 1.0, %v861
    %v863 = vrcp.pop %v860
    %v864 = vmul.f32 1.0, %v863
    %v865 = vtanh.pop %v852
    %v867 = vrot.slane %v763, 6
    %v869 = vmul.f32 %v862, %v867
    %v870 = vmul.f32 %v862, %v865
    %872 = vrot.lane.b32.xlu0 %v870, 64
    %v873 = vpop.permute.xlu0 %872
    %v875 = vadd.f32 %v869, %v873
    %v876 = vtanh.pop %v875
    %v877 = vmul.f32 %v864, %v876
    %879 = vrot.lane.b32.xlu0 %v877, 64
    %v880 = vpop.permute.xlu0 %879
    %882 = vst.msk [vmem:[#allocation2 + $0x8] sm:$0xc] %vm425, %v880
    %883 = vst.msk [vmem:[#allocation2 + $0x2] sm:$0xc] %vm427, %v880
    %v884 = vrot.slane %v877, 2
    %885 = vrot.lane.b32.xlu0 %v884, 64
    %v886 = vpop.permute.xlu0 %885
    %v887 = vsel %vm208, %v886, 0
    %889 = vmatprep.subr.mxu0 %v193
    %890 = vmatpush1.msra.mxu0 %v192
    %891 = vmatprep.subr.mxu0 %v195
    %892 = vmatpush1.msra.mxu0 %v194
    %893 = vmatprep.subr.mxu0 %v197
    %894 = vmatpush1.msra.mxu0 %v196
    %895 = vmatprep.subr.mxu0 %v199
    %896 = vmatpush1.msra.mxu0 %v198
    %897 = vmatprep.subr.mxu0 %v201
    %898 = vmatpush1.msra.mxu0 %v200
    %899 = vmatprep.subr.mxu0 %v203
    %900 = vmatpush1.msra.mxu0 %v202
    %901 = vmatprep.subr.mxu0 %v205
    %902 = vmatpush1.msra.mxu0 %v204
    %903 = vmatprep.subr.mxu0 %v207
    %904 = vmatpush1.msra.mxu0 %v206
    %905 = vmatprep.subr.mxu0 0.0
    %906 = vmatpush1.msra.mxu0 0.0
    %907 = vmatprep.subr.mxu0 0.0
    %908 = vmatpush1.msra.mxu0 0.0
    %909 = vmatprep.subr.mxu0 0.0
    %910 = vmatpush1.msra.mxu0 0.0
    %911 = vmatprep.subr.mxu0 0.0
    %912 = vmatpush1.msra.mxu0 0.0
    %913 = vmatprep.subr.mxu0 0.0
    %914 = vmatpush1.msra.mxu0 0.0
    %915 = vmatprep.subr.mxu0 0.0
    %916 = vmatpush1.msra.mxu0 0.0
    %917 = vmatprep.subr.mxu0 0.0
    %918 = vmatpush1.msra.mxu0 0.0
    %919 = vmatprep.subr.mxu0 0.0
    %920 = vmatpush1.msra.mxu0 0.0
    %921 = vmatprep.subr.mxu0 0.0
    %922 = vmatpush1.msra.mxu0 0.0
    %923 = vmatprep.subr.mxu0 0.0
    %924 = vmatpush1.msra.mxu0 0.0
    %925 = vmatprep.subr.mxu0 0.0
    %926 = vmatpush1.msra.mxu0 0.0
    %927 = vmatprep.subr.mxu0 0.0
    %928 = vmatpush1.msra.mxu0 0.0
    %929 = vmatprep.subr.mxu0 0.0
    %930 = vmatpush1.msra.mxu0 0.0
    %931 = vmatprep.subr.mxu0 0.0
    %932 = vmatpush1.msra.mxu0 0.0
    %933 = vmatprep.subr.mxu0 0.0
    %934 = vmatpush1.msra.mxu0 0.0
    %935 = vmatprep.subr.mxu0 0.0
    %936 = vmatpush1.msra.mxu0 0.0
    %937 = vmatprep.subr.mxu0 0.0
    %938 = vmatpush1.msra.mxu0 0.0
    %939 = vmatprep.subr.mxu0 0.0
    %940 = vmatpush1.msra.mxu0 0.0
    %941 = vmatprep.subr.mxu0 0.0
    %942 = vmatpush1.msra.mxu0 0.0
    %943 = vmatprep.subr.mxu0 0.0
    %944 = vmatpush1.msra.mxu0 0.0
    %945 = vmatprep.subr.mxu0 0.0
    %946 = vmatpush1.msra.mxu0 0.0
    %947 = vmatprep.subr.mxu0 0.0
    %948 = vmatpush1.msra.mxu0 0.0
    %949 = vmatprep.subr.mxu0 0.0
    %950 = vmatpush1.msra.mxu0 0.0
    %951 = vmatprep.subr.mxu0 0.0
    %952 = vmatpush1.msra.mxu0 0.0
    %953 = vmatprep.mubr.f32.mxu0 0.0
    %954 = vmatmul.mubr.f32.gmra.mrb[0].mxu0 %v887
    %v955 = vpop.f32.mrb[0].mxu0
    %v956 = vadd.f32 0.0, %v955
    %v957 = vpop.f32.mrb[0].mxu0
    %v958 = vadd.f32 0.0, %v957
    %959 = vdwg.mxu0
    %v962 = vrot.slane %v956, 4
    %v963 = vrot.slane %v958, 4
    %v966 = vadd.f32 %v188, %v962
    %v967 = vadd.f32 %v190, %v963
    %v968 = vxor.u32 %v966, 2147483648
    %v969 = vxor.u32 %v967, 2147483648
    %v970 = vmul.f32 %v968, 1.442695
    %v971 = vpow.pop %v970
    %v972 = vmul.f32 %v969, 1.442695
    %v973 = vpow.pop %v972
    %v974 = vadd.f32 %v971, 1.0
    %v975 = vadd.f32 %v973, 1.0
    %v976 = vrcp.pop %v974
    %v977 = vmul.f32 1.0, %v976
    %v978 = vrcp.pop %v975
    %v979 = vmul.f32 1.0, %v978
    %v980 = vtanh.pop %v967
    %v982 = vrot.slane %v875, 6
    %v984 = vmul.f32 %v977, %v982
    %v985 = vmul.f32 %v977, %v980
    %987 = vrot.lane.b32.xlu0 %v985, 64
    %v988 = vpop.permute.xlu0 %987
    %v990 = vadd.f32 %v984, %v988
    %v991 = vtanh.pop %v990
    %v992 = vmul.f32 %v979, %v991
    %994 = vrot.lane.b32.xlu0 %v992, 64
    %v995 = vpop.permute.xlu0 %994
    %997 = vst.msk [vmem:[#allocation2 + $0x8] sm:$0x30] %vm542, %v995
    %998 = vst.msk [vmem:[#allocation2 - $0x2] sm:$0x30] %vm544, %v995
    %v999 = vrot.slane %v992, 4
    %1000 = vrot.lane.b32.xlu0 %v999, 64
    %v1001 = vpop.permute.xlu0 %1000
    %v1002 = vsel %vm208, %v1001, 0
    %1004 = vmatprep.subr.mxu0 %v193
    %1005 = vmatpush1.msra.mxu0 %v192
    %1006 = vmatprep.subr.mxu0 %v195
    %1007 = vmatpush1.msra.mxu0 %v194
    %1008 = vmatprep.subr.mxu0 %v197
    %1009 = vmatpush1.msra.mxu0 %v196
    %1010 = vmatprep.subr.mxu0 %v199
    %1011 = vmatpush1.msra.mxu0 %v198
    %1012 = vmatprep.subr.mxu0 %v201
    %1013 = vmatpush1.msra.mxu0 %v200
    %1014 = vmatprep.subr.mxu0 %v203
    %1015 = vmatpush1.msra.mxu0 %v202
    %1016 = vmatprep.subr.mxu0 %v205
    %1017 = vmatpush1.msra.mxu0 %v204
    %1018 = vmatprep.subr.mxu0 %v207
    %1019 = vmatpush1.msra.mxu0 %v206
    %1020 = vmatprep.subr.mxu0 0.0
    %1021 = vmatpush1.msra.mxu0 0.0
    %1022 = vmatprep.subr.mxu0 0.0
    %1023 = vmatpush1.msra.mxu0 0.0
    %1024 = vmatprep.subr.mxu0 0.0
    %1025 = vmatpush1.msra.mxu0 0.0
    %1026 = vmatprep.subr.mxu0 0.0
    %1027 = vmatpush1.msra.mxu0 0.0
    %1028 = vmatprep.subr.mxu0 0.0
    %1029 = vmatpush1.msra.mxu0 0.0
    %1030 = vmatprep.subr.mxu0 0.0
    %1031 = vmatpush1.msra.mxu0 0.0
    %1032 = vmatprep.subr.mxu0 0.0
    %1033 = vmatpush1.msra.mxu0 0.0
    %1034 = vmatprep.subr.mxu0 0.0
    %1035 = vmatpush1.msra.mxu0 0.0
    %1036 = vmatprep.subr.mxu0 0.0
    %1037 = vmatpush1.msra.mxu0 0.0
    %1038 = vmatprep.subr.mxu0 0.0
    %1039 = vmatpush1.msra.mxu0 0.0
    %1040 = vmatprep.subr.mxu0 0.0
    %1041 = vmatpush1.msra.mxu0 0.0
    %1042 = vmatprep.subr.mxu0 0.0
    %1043 = vmatpush1.msra.mxu0 0.0
    %1044 = vmatprep.subr.mxu0 0.0
    %1045 = vmatpush1.msra.mxu0 0.0
    %1046 = vmatprep.subr.mxu0 0.0
    %1047 = vmatpush1.msra.mxu0 0.0
    %1048 = vmatprep.subr.mxu0 0.0
    %1049 = vmatpush1.msra.mxu0 0.0
    %1050 = vmatprep.subr.mxu0 0.0
    %1051 = vmatpush1.msra.mxu0 0.0
    %1052 = vmatprep.subr.mxu0 0.0
    %1053 = vmatpush1.msra.mxu0 0.0
    %1054 = vmatprep.subr.mxu0 0.0
    %1055 = vmatpush1.msra.mxu0 0.0
    %1056 = vmatprep.subr.mxu0 0.0
    %1057 = vmatpush1.msra.mxu0 0.0
    %1058 = vmatprep.subr.mxu0 0.0
    %1059 = vmatpush1.msra.mxu0 0.0
    %1060 = vmatprep.subr.mxu0 0.0
    %1061 = vmatpush1.msra.mxu0 0.0
    %1062 = vmatprep.subr.mxu0 0.0
    %1063 = vmatpush1.msra.mxu0 0.0
    %1064 = vmatprep.subr.mxu0 0.0
    %1065 = vmatpush1.msra.mxu0 0.0
    %1066 = vmatprep.subr.mxu0 0.0
    %1067 = vmatpush1.msra.mxu0 0.0
    %1068 = vmatprep.mubr.f32.mxu0 0.0
    %1069 = vmatmul.mubr.f32.gmra.mrb[0].mxu0 %v1002
    %v1070 = vpop.f32.mrb[0].mxu0
    %v1071 = vadd.f32 0.0, %v1070
    %v1072 = vpop.f32.mrb[0].mxu0
    %v1073 = vadd.f32 0.0, %v1072
    %1074 = vdwg.mxu0
    %v1077 = vrot.slane %v1071, 2
    %v1078 = vrot.slane %v1073, 2
    %v1081 = vadd.f32 %v188, %v1077
    %v1082 = vadd.f32 %v190, %v1078
    %v1083 = vxor.u32 %v1081, 2147483648
    %v1084 = vxor.u32 %v1082, 2147483648
    %v1085 = vmul.f32 %v1083, 1.442695
    %v1086 = vpow.pop %v1085
    %v1087 = vmul.f32 %v1084, 1.442695
    %v1088 = vpow.pop %v1087
    %v1089 = vadd.f32 %v1086, 1.0
    %v1090 = vadd.f32 %v1088, 1.0
    %v1091 = vrcp.pop %v1089
    %v1092 = vmul.f32 1.0, %v1091
    %v1093 = vrcp.pop %v1090
    %v1094 = vmul.f32 1.0, %v1093
    %v1095 = vtanh.pop %v1082
    %v1097 = vrot.slane %v990, 6
    %v1099 = vmul.f32 %v1092, %v1097
    %v1100 = vmul.f32 %v1092, %v1095
    %1102 = vrot.lane.b32.xlu0 %v1100, 64
    %v1103 = vpop.permute.xlu0 %1102
    %v1105 = vadd.f32 %v1099, %v1103
    %v1106 = vtanh.pop %v1105
    %v1107 = vmul.f32 %v1094, %v1106
    %1109 = vrot.lane.b32.xlu0 %v1107, 64
    %v1110 = vpop.permute.xlu0 %1109
    %1112 = vst.msk [vmem:[#allocation2 + $0x8] sm:$0xc0] %vm659, %v1110
    %1113 = vst.msk [vmem:[#allocation2 - $0x6] sm:$0xc0] %vm661, %v1110
    %v1114 = vld [vmem:[#allocation2] sm:$0xff]
    %v1115 = vld [vmem:[#allocation2 + $0x8] sm:$0xff]
    %v1116 = vld [vmem:[#allocation8] sm:$0xff]
    %v1117 = vld [vmem:[#allocation8 + $0x8] sm:$0xff]
    %v1118 = vld [vmem:[#allocation8 + $0x10] sm:$0xff]
    %v1119 = vld [vmem:[#allocation8 + $0x18] sm:$0xff]
    %v1120 = vld [vmem:[#allocation8 + $0x20] sm:$0xff]
    %v1121 = vld [vmem:[#allocation8 + $0x28] sm:$0xff]
    %v1122 = vld [vmem:[#allocation8 + $0x30] sm:$0xff]
    %v1123 = vld [vmem:[#allocation8 + $0x38] sm:$0xff]
    %v1124 = vld [vmem:[#allocation8 + $0x40] sm:$0xff]
    %v1125 = vld [vmem:[#allocation8 + $0x48] sm:$0xff]
    %v1126 = vld [vmem:[#allocation8 + $0x50] sm:$0xff]
    %v1127 = vld [vmem:[#allocation8 + $0x58] sm:$0xff]
    %v1128 = vld [vmem:[#allocation8 + $0x60] sm:$0xff]
    %v1129 = vld [vmem:[#allocation8 + $0x68] sm:$0xff]
    %v1130 = vld [vmem:[#allocation8 + $0x70] sm:$0xff]
    %v1131 = vld [vmem:[#allocation8 + $0x78] sm:$0xff]
    %v1132 = vld [vmem:[#allocation9] sm:$0x3]
    %v1134 = vlaneseq
    %v1135 = vshrl.u32 %v1134, 7
    %v1136 = vsub.s32 0, %v1135
    %v1137 = vrot.slane %v1132, %v1136
    %v1138 = vlaneseq
    %v1139 = vshrl.u32 %v1138, 7
    %v1140 = vsub.s32 1, %v1139
    %v1141 = vrot.slane %v1132, %v1140
    %v1145 = vsel %vm208, %v1114, 0
    %v1148 = vsel %vm208, %v1115, 0
    %1150 = vmatprep.subr.mxu0 %v1117
    %1151 = vmatpush1.msra.mxu0 %v1116
    %1152 = vmatprep.subr.mxu0 %v1119
    %1153 = vmatpush1.msra.mxu0 %v1118
    %1154 = vmatprep.subr.mxu0 %v1121
    %1155 = vmatpush1.msra.mxu0 %v1120
    %1156 = vmatprep.subr.mxu0 %v1123
    %1157 = vmatpush1.msra.mxu0 %v1122
    %1158 = vmatprep.subr.mxu0 %v1125
    %1159 = vmatpush1.msra.mxu0 %v1124
    %1160 = vmatprep.subr.mxu0 %v1127
    %1161 = vmatpush1.msra.mxu0 %v1126
    %1162 = vmatprep.subr.mxu0 %v1129
    %1163 = vmatpush1.msra.mxu0 %v1128
    %1164 = vmatprep.subr.mxu0 %v1131
    %1165 = vmatpush1.msra.mxu0 %v1130
    %1166 = vmatprep.subr.mxu0 0.0
    %1167 = vmatpush1.msra.mxu0 0.0
    %1168 = vmatprep.subr.mxu0 0.0
    %1169 = vmatpush1.msra.mxu0 0.0
    %1170 = vmatprep.subr.mxu0 0.0
    %1171 = vmatpush1.msra.mxu0 0.0
    %1172 = vmatprep.subr.mxu0 0.0
    %1173 = vmatpush1.msra.mxu0 0.0
    %1174 = vmatprep.subr.mxu0 0.0
    %1175 = vmatpush1.msra.mxu0 0.0
    %1176 = vmatprep.subr.mxu0 0.0
    %1177 = vmatpush1.msra.mxu0 0.0
    %1178 = vmatprep.subr.mxu0 0.0
    %1179 = vmatpush1.msra.mxu0 0.0
    %1180 = vmatprep.subr.mxu0 0.0
    %1181 = vmatpush1.msra.mxu0 0.0
    %1182 = vmatprep.subr.mxu0 0.0
    %1183 = vmatpush1.msra.mxu0 0.0
    %1184 = vmatprep.subr.mxu0 0.0
    %1185 = vmatpush1.msra.mxu0 0.0
    %1186 = vmatprep.subr.mxu0 0.0
    %1187 = vmatpush1.msra.mxu0 0.0
    %1188 = vmatprep.subr.mxu0 0.0
    %1189 = vmatpush1.msra.mxu0 0.0
    %1190 = vmatprep.subr.mxu0 0.0
    %1191 = vmatpush1.msra.mxu0 0.0
    %1192 = vmatprep.subr.mxu0 0.0
    %1193 = vmatpush1.msra.mxu0 0.0
    %1194 = vmatprep.subr.mxu0 0.0
    %1195 = vmatpush1.msra.mxu0 0.0
    %1196 = vmatprep.subr.mxu0 0.0
    %1197 = vmatpush1.msra.mxu0 0.0
    %1198 = vmatprep.subr.mxu0 0.0
    %1199 = vmatpush1.msra.mxu0 0.0
    %1200 = vmatprep.subr.mxu0 0.0
    %1201 = vmatpush1.msra.mxu0 0.0
    %1202 = vmatprep.subr.mxu0 0.0
    %1203 = vmatpush1.msra.mxu0 0.0
    %1204 = vmatprep.subr.mxu0 0.0
    %1205 = vmatpush1.msra.mxu0 0.0
    %1206 = vmatprep.subr.mxu0 0.0
    %1207 = vmatpush1.msra.mxu0 0.0
    %1208 = vmatprep.subr.mxu0 0.0
    %1209 = vmatpush1.msra.mxu0 0.0
    %1210 = vmatprep.subr.mxu0 0.0
    %1211 = vmatpush1.msra.mxu0 0.0
    %1212 = vmatprep.subr.mxu0 0.0
    %1213 = vmatpush1.msra.mxu0 0.0
    %1214 = vmatprep.mubr.f32.mxu0 0.0
    %1215 = vmatmul.mubr.f32.gmra.mrb[0].mxu0 %v1145
    %v1216 = vpop.f32.mrb[0].mxu0
    %v1217 = vadd.f32 %v1137, %v1216
    %v1218 = vpop.f32.mrb[0].mxu0
    %1219 = vmatprep.mubr.f32.mxu0 0.0
    %1220 = vmatmul.mubr.f32.gmra.mrb[0].mxu0 %v1148
    %v1221 = vpop.f32.mrb[0].mxu0
    %v1222 = vadd.f32 %v1137, %v1221
    %v1223 = vpop.f32.mrb[0].mxu0
    %v1224 = vadd.f32 %v1141, %v1223
    %1225 = vdwg.mxu0
    %v1226 = vld [vmem:[%s6] sm:$0xff]
    %v1227 = vld [vmem:[%s6 + $0x8] sm:$0xff]
    %v1228 = vld [vmem:[%s6 + $0x10] sm:$0xff]
    %v1229 = vld [vmem:[%s6 + $0x18] sm:$0xff]
    %v1230 = vsel %vm108, 0.0, 0
    %1232 = vmatprep.subr.mxu0 0.0
    %1233 = vmatpush1.msra.mxu0 %v1226
    %1234 = vmatprep.subr.mxu0 0.0
    %1235 = vmatpush1.msra.mxu0 %v1227
    %1236 = vmatprep.subr.mxu0 0.0
    %1237 = vmatpush1.msra.mxu0 %v1228
    %1238 = vmatprep.subr.mxu0 0.0
    %1239 = vmatpush1.msra.mxu0 %v1229
    %1240 = vmatprep.subr.mxu0 0.0
    %1241 = vmatpush1.msra.mxu0 0.0
    %1242 = vmatprep.subr.mxu0 0.0
    %1243 = vmatpush1.msra.mxu0 0.0
    %1244 = vmatprep.subr.mxu0 0.0
    %1245 = vmatpush1.msra.mxu0 0.0
    %1246 = vmatprep.subr.mxu0 0.0
    %1247 = vmatpush1.msra.mxu0 0.0
    %1248 = vmatprep.subr.mxu0 0.0
    %1249 = vmatpush1.msra.mxu0 0.0
    %1250 = vmatprep.subr.mxu0 0.0
    %1251 = vmatpush1.msra.mxu0 0.0
    %1252 = vmatprep.subr.mxu0 0.0
    %1253 = vmatpush1.msra.mxu0 0.0
    %1254 = vmatprep.subr.mxu0 0.0
    %1255 = vmatpush1.msra.mxu0 0.0
    %1256 = vmatprep.subr.mxu0 0.0
    %1257 = vmatpush1.msra.mxu0 0.0
    %1258 = vmatprep.subr.mxu0 0.0
    %1259 = vmatpush1.msra.mxu0 0.0
    %1260 = vmatprep.subr.mxu0 0.0
    %1261 = vmatpush1.msra.mxu0 0.0
    %1262 = vmatprep.subr.mxu0 0.0
    %1263 = vmatpush1.msra.mxu0 0.0
    %1264 = vmatprep.subr.mxu0 0.0
    %1265 = vmatpush1.msra.mxu0 0.0
    %1266 = vmatprep.subr.mxu0 0.0
    %1267 = vmatpush1.msra.mxu0 0.0
    %1268 = vmatprep.subr.mxu0 0.0
    %1269 = vmatpush1.msra.mxu0 0.0
    %1270 = vmatprep.subr.mxu0 0.0
    %1271 = vmatpush1.msra.mxu0 0.0
    %1272 = vmatprep.subr.mxu0 0.0
    %1273 = vmatpush1.msra.mxu0 0.0
    %1274 = vmatprep.subr.mxu0 0.0
    %1275 = vmatpush1.msra.mxu0 0.0
    %1276 = vmatprep.subr.mxu0 0.0
    %1277 = vmatpush1.msra.mxu0 0.0
    %1278 = vmatprep.subr.mxu0 0.0
    %1279 = vmatpush1.msra.mxu0 0.0
    %1280 = vmatprep.subr.mxu0 0.0
    %1281 = vmatpush1.msra.mxu0 0.0
    %1282 = vmatprep.subr.mxu0 0.0
    %1283 = vmatpush1.msra.mxu0 0.0
    %1284 = vmatprep.subr.mxu0 0.0
    %1285 = vmatpush1.msra.mxu0 0.0
    %1286 = vmatprep.subr.mxu0 0.0
    %1287 = vmatpush1.msra.mxu0 0.0
    %1288 = vmatprep.subr.mxu0 0.0
    %1289 = vmatpush1.msra.mxu0 0.0
    %1290 = vmatprep.subr.mxu0 0.0
    %1291 = vmatpush1.msra.mxu0 0.0
    %1292 = vmatprep.subr.mxu0 0.0
    %1293 = vmatpush1.msra.mxu0 0.0
    %1294 = vmatprep.subr.mxu0 0.0
    %1295 = vmatpush1.msra.mxu0 0.0
    %1296 = vmatprep.mubr.f32.mxu0 0.0
    %1297 = vmatmul.mubr.f32.gmra.mrb[0].mxu0 %v1230
    %v1298 = vpop.f32.mrb[0].mxu0
    %v1299 = vadd.f32 0.0, %v1298
    %v1300 = vpop.f32.mrb[0].mxu0
    %1301 = vdwg.mxu0
    %v1302 = vadd.f32 %v1217, %v1299
    %v1303 = vxor.u32 %v1302, 2147483648
    %v1304 = vmul.f32 %v1303, 1.442695
    %v1305 = vpow.pop %v1304
    %v1306 = vadd.f32 %v1305, 1.0
    %v1307 = vrcp.pop %v1306
    %v1308 = vmul.f32 1.0, %v1307
    %v1309 = vtanh.pop %v1302
    %v1310 = vmul.f32 %v1308, 0.0
    %1312 = vrot.lane.b32.xlu0 %v1309, 64
    %v1313 = vpop.permute.xlu0 %1312
    %v1315 = vmul.f32 %v1308, %v1313
    %1317 = vrot.lane.b32.xlu0 %v1315, 32
    %v1318 = vpop.permute.xlu0 %1317
    %v1320 = vadd.f32 %v1310, %v1318
    %v1321 = vtanh.pop %v1320
    %1323 = vrot.lane.b32.xlu0 %v1321, 64
    %v1324 = vpop.permute.xlu0 %1323
    %v1326 = vmul.f32 %v1308, %v1324
    %1328 = vrot.lane.b32.xlu0 %v1326, 32
    %v1329 = vpop.permute.xlu0 %1328
    %v1330 = vsel %vm108, %v1329, 0
    %1332 = vmatprep.subr.mxu0 0.0
    %1333 = vmatpush1.msra.mxu0 %v1226
    %1334 = vmatprep.subr.mxu0 0.0
    %1335 = vmatpush1.msra.mxu0 %v1227
    %1336 = vmatprep.subr.mxu0 0.0
    %1337 = vmatpush1.msra.mxu0 %v1228
    %1338 = vmatprep.subr.mxu0 0.0
    %1339 = vmatpush1.msra.mxu0 %v1229
    %1340 = vmatprep.subr.mxu0 0.0
    %1341 = vmatpush1.msra.mxu0 0.0
    %1342 = vmatprep.subr.mxu0 0.0
    %1343 = vmatpush1.msra.mxu0 0.0
    %1344 = vmatprep.subr.mxu0 0.0
    %1345 = vmatpush1.msra.mxu0 0.0
    %1346 = vmatprep.subr.mxu0 0.0
    %1347 = vmatpush1.msra.mxu0 0.0
    %1348 = vmatprep.subr.mxu0 0.0
    %1349 = vmatpush1.msra.mxu0 0.0
    %1350 = vmatprep.subr.mxu0 0.0
    %1351 = vmatpush1.msra.mxu0 0.0
    %1352 = vmatprep.subr.mxu0 0.0
    %1353 = vmatpush1.msra.mxu0 0.0
    %1354 = vmatprep.subr.mxu0 0.0
    %1355 = vmatpush1.msra.mxu0 0.0
    %1356 = vmatprep.subr.mxu0 0.0
    %1357 = vmatpush1.msra.mxu0 0.0
    %1358 = vmatprep.subr.mxu0 0.0
    %1359 = vmatpush1.msra.mxu0 0.0
    %1360 = vmatprep.subr.mxu0 0.0
    %1361 = vmatpush1.msra.mxu0 0.0
    %1362 = vmatprep.subr.mxu0 0.0
    %1363 = vmatpush1.msra.mxu0 0.0
    %1364 = vmatprep.subr.mxu0 0.0
    %1365 = vmatpush1.msra.mxu0 0.0
    %1366 = vmatprep.subr.mxu0 0.0
    %1367 = vmatpush1.msra.mxu0 0.0
    %1368 = vmatprep.subr.mxu0 0.0
    %1369 = vmatpush1.msra.mxu0 0.0
    %1370 = vmatprep.subr.mxu0 0.0
    %1371 = vmatpush1.msra.mxu0 0.0
    %1372 = vmatprep.subr.mxu0 0.0
    %1373 = vmatpush1.msra.mxu0 0.0
    %1374 = vmatprep.subr.mxu0 0.0
    %1375 = vmatpush1.msra.mxu0 0.0
    %1376 = vmatprep.subr.mxu0 0.0
    %1377 = vmatpush1.msra.mxu0 0.0
    %1378 = vmatprep.subr.mxu0 0.0
    %1379 = vmatpush1.msra.mxu0 0.0
    %1380 = vmatprep.subr.mxu0 0.0
    %1381 = vmatpush1.msra.mxu0 0.0
    %1382 = vmatprep.subr.mxu0 0.0
    %1383 = vmatpush1.msra.mxu0 0.0
    %1384 = vmatprep.subr.mxu0 0.0
    %1385 = vmatpush1.msra.mxu0 0.0
    %1386 = vmatprep.subr.mxu0 0.0
    %1387 = vmatpush1.msra.mxu0 0.0
    %1388 = vmatprep.subr.mxu0 0.0
    %1389 = vmatpush1.msra.mxu0 0.0
    %1390 = vmatprep.subr.mxu0 0.0
    %1391 = vmatpush1.msra.mxu0 0.0
    %1392 = vmatprep.subr.mxu0 0.0
    %1393 = vmatpush1.msra.mxu0 0.0
    %1394 = vmatprep.subr.mxu0 0.0
    %1395 = vmatpush1.msra.mxu0 0.0
    %1396 = vmatprep.mubr.f32.mxu0 0.0
    %1397 = vmatmul.mubr.f32.gmra.mrb[0].mxu0 %v1330
    %v1398 = vpop.f32.mrb[0].mxu0
    %v1399 = vadd.f32 0.0, %v1398
    %v1400 = vpop.f32.mrb[0].mxu0
    %1401 = vdwg.mxu0
    %v1403 = vrot.slane %v1399, 6
    %v1405 = vadd.f32 %v1217, %v1403
    %v1406 = vxor.u32 %v1405, 2147483648
    %v1407 = vmul.f32 %v1406, 1.442695
    %v1408 = vpow.pop %v1407
    %v1409 = vadd.f32 %v1408, 1.0
    %v1410 = vrcp.pop %v1409
    %v1411 = vmul.f32 1.0, %v1410
    %v1412 = vtanh.pop %v1405
    %v1414 = vrot.slane %v1320, 6
    %v1416 = vmul.f32 %v1411, %v1414
    %1418 = vrot.lane.b32.xlu0 %v1412, 64
    %v1419 = vpop.permute.xlu0 %1418
    %v1421 = vmul.f32 %v1411, %v1419
    %1423 = vrot.lane.b32.xlu0 %v1421, 32
    %v1424 = vpop.permute.xlu0 %1423
    %v1426 = vadd.f32 %v1416, %v1424
    %v1427 = vtanh.pop %v1426
    %1429 = vrot.lane.b32.xlu0 %v1427, 64
    %v1430 = vpop.permute.xlu0 %1429
    %v1432 = vmul.f32 %v1411, %v1430
    %v1434 = vrot.slane %v1432, 2
    %1435 = vrot.lane.b32.xlu0 %v1434, 32
    %v1436 = vpop.permute.xlu0 %1435
    %v1437 = vsel %vm108, %v1436, 0
    %1439 = vmatprep.subr.mxu0 0.0
    %1440 = vmatpush1.msra.mxu0 %v1226
    %1441 = vmatprep.subr.mxu0 0.0
    %1442 = vmatpush1.msra.mxu0 %v1227
    %1443 = vmatprep.subr.mxu0 0.0
    %1444 = vmatpush1.msra.mxu0 %v1228
    %1445 = vmatprep.subr.mxu0 0.0
    %1446 = vmatpush1.msra.mxu0 %v1229
    %1447 = vmatprep.subr.mxu0 0.0
    %1448 = vmatpush1.msra.mxu0 0.0
    %1449 = vmatprep.subr.mxu0 0.0
    %1450 = vmatpush1.msra.mxu0 0.0
    %1451 = vmatprep.subr.mxu0 0.0
    %1452 = vmatpush1.msra.mxu0 0.0
    %1453 = vmatprep.subr.mxu0 0.0
    %1454 = vmatpush1.msra.mxu0 0.0
    %1455 = vmatprep.subr.mxu0 0.0
    %1456 = vmatpush1.msra.mxu0 0.0
    %1457 = vmatprep.subr.mxu0 0.0
    %1458 = vmatpush1.msra.mxu0 0.0
    %1459 = vmatprep.subr.mxu0 0.0
    %1460 = vmatpush1.msra.mxu0 0.0
    %1461 = vmatprep.subr.mxu0 0.0
    %1462 = vmatpush1.msra.mxu0 0.0
    %1463 = vmatprep.subr.mxu0 0.0
    %1464 = vmatpush1.msra.mxu0 0.0
    %1465 = vmatprep.subr.mxu0 0.0
    %1466 = vmatpush1.msra.mxu0 0.0
    %1467 = vmatprep.subr.mxu0 0.0
    %1468 = vmatpush1.msra.mxu0 0.0
    %1469 = vmatprep.subr.mxu0 0.0
    %1470 = vmatpush1.msra.mxu0 0.0
    %1471 = vmatprep.subr.mxu0 0.0
    %1472 = vmatpush1.msra.mxu0 0.0
    %1473 = vmatprep.subr.mxu0 0.0
    %1474 = vmatpush1.msra.mxu0 0.0
    %1475 = vmatprep.subr.mxu0 0.0
    %1476 = vmatpush1.msra.mxu0 0.0
    %1477 = vmatprep.subr.mxu0 0.0
    %1478 = vmatpush1.msra.mxu0 0.0
    %1479 = vmatprep.subr.mxu0 0.0
    %1480 = vmatpush1.msra.mxu0 0.0
    %1481 = vmatprep.subr.mxu0 0.0
    %1482 = vmatpush1.msra.mxu0 0.0
    %1483 = vmatprep.subr.mxu0 0.0
    %1484 = vmatpush1.msra.mxu0 0.0
    %1485 = vmatprep.subr.mxu0 0.0
    %1486 = vmatpush1.msra.mxu0 0.0
    %1487 = vmatprep.subr.mxu0 0.0
    %1488 = vmatpush1.msra.mxu0 0.0
    %1489 = vmatprep.subr.mxu0 0.0
    %1490 = vmatpush1.msra.mxu0 0.0
    %1491 = vmatprep.subr.mxu0 0.0
    %1492 = vmatpush1.msra.mxu0 0.0
    %1493 = vmatprep.subr.mxu0 0.0
    %1494 = vmatpush1.msra.mxu0 0.0
    %1495 = vmatprep.subr.mxu0 0.0
    %1496 = vmatpush1.msra.mxu0 0.0
    %1497 = vmatprep.subr.mxu0 0.0
    %1498 = vmatpush1.msra.mxu0 0.0
    %1499 = vmatprep.subr.mxu0 0.0
    %1500 = vmatpush1.msra.mxu0 0.0
    %1501 = vmatprep.subr.mxu0 0.0
    %1502 = vmatpush1.msra.mxu0 0.0
    %1503 = vmatprep.mubr.f32.mxu0 0.0
    %1504 = vmatmul.mubr.f32.gmra.mrb[0].mxu0 %v1437
    %v1505 = vpop.f32.mrb[0].mxu0
    %v1506 = vadd.f32 0.0, %v1505
    %v1507 = vpop.f32.mrb[0].mxu0
    %1508 = vdwg.mxu0
    %v1510 = vrot.slane %v1506, 4
    %v1512 = vadd.f32 %v1217, %v1510
    %v1513 = vxor.u32 %v1512, 2147483648
    %v1514 = vmul.f32 %v1513, 1.442695
    %v1515 = vpow.pop %v1514
    %v1516 = vadd.f32 %v1515, 1.0
    %v1517 = vrcp.pop %v1516
    %v1518 = vmul.f32 1.0, %v1517
    %v1519 = vtanh.pop %v1512
    %v1521 = vrot.slane %v1426, 6
    %v1523 = vmul.f32 %v1518, %v1521
    %1525 = vrot.lane.b32.xlu0 %v1519, 64
    %v1526 = vpop.permute.xlu0 %1525
    %v1528 = vmul.f32 %v1518, %v1526
    %1530 = vrot.lane.b32.xlu0 %v1528, 32
    %v1531 = vpop.permute.xlu0 %1530
    %v1533 = vadd.f32 %v1523, %v1531
    %v1534 = vtanh.pop %v1533
    %1536 = vrot.lane.b32.xlu0 %v1534, 64
    %v1537 = vpop.permute.xlu0 %1536
    %v1539 = vmul.f32 %v1518, %v1537
    %v1541 = vrot.slane %v1539, 4
    %1542 = vrot.lane.b32.xlu0 %v1541, 32
    %v1543 = vpop.permute.xlu0 %1542
    %v1544 = vsel %vm108, %v1543, 0
    %1546 = vmatprep.subr.mxu0 0.0
    %1547 = vmatpush1.msra.mxu0 %v1226
    %1548 = vmatprep.subr.mxu0 0.0
    %1549 = vmatpush1.msra.mxu0 %v1227
    %1550 = vmatprep.subr.mxu0 0.0
    %1551 = vmatpush1.msra.mxu0 %v1228
    %1552 = vmatprep.subr.mxu0 0.0
    %1553 = vmatpush1.msra.mxu0 %v1229
    %1554 = vmatprep.subr.mxu0 0.0
    %1555 = vmatpush1.msra.mxu0 0.0
    %1556 = vmatprep.subr.mxu0 0.0
    %1557 = vmatpush1.msra.mxu0 0.0
    %1558 = vmatprep.subr.mxu0 0.0
    %1559 = vmatpush1.msra.mxu0 0.0
    %1560 = vmatprep.subr.mxu0 0.0
    %1561 = vmatpush1.msra.mxu0 0.0
    %1562 = vmatprep.subr.mxu0 0.0
    %1563 = vmatpush1.msra.mxu0 0.0
    %1564 = vmatprep.subr.mxu0 0.0
    %1565 = vmatpush1.msra.mxu0 0.0
    %1566 = vmatprep.subr.mxu0 0.0
    %1567 = vmatpush1.msra.mxu0 0.0
    %1568 = vmatprep.subr.mxu0 0.0
    %1569 = vmatpush1.msra.mxu0 0.0
    %1570 = vmatprep.subr.mxu0 0.0
    %1571 = vmatpush1.msra.mxu0 0.0
    %1572 = vmatprep.subr.mxu0 0.0
    %1573 = vmatpush1.msra.mxu0 0.0
    %1574 = vmatprep.subr.mxu0 0.0
    %1575 = vmatpush1.msra.mxu0 0.0
    %1576 = vmatprep.subr.mxu0 0.0
    %1577 = vmatpush1.msra.mxu0 0.0
    %1578 = vmatprep.subr.mxu0 0.0
    %1579 = vmatpush1.msra.mxu0 0.0
    %1580 = vmatprep.subr.mxu0 0.0
    %1581 = vmatpush1.msra.mxu0 0.0
    %1582 = vmatprep.subr.mxu0 0.0
    %1583 = vmatpush1.msra.mxu0 0.0
    %1584 = vmatprep.subr.mxu0 0.0
    %1585 = vmatpush1.msra.mxu0 0.0
    %1586 = vmatprep.subr.mxu0 0.0
    %1587 = vmatpush1.msra.mxu0 0.0
    %1588 = vmatprep.subr.mxu0 0.0
    %1589 = vmatpush1.msra.mxu0 0.0
    %1590 = vmatprep.subr.mxu0 0.0
    %1591 = vmatpush1.msra.mxu0 0.0
    %1592 = vmatprep.subr.mxu0 0.0
    %1593 = vmatpush1.msra.mxu0 0.0
    %1594 = vmatprep.subr.mxu0 0.0
    %1595 = vmatpush1.msra.mxu0 0.0
    %1596 = vmatprep.subr.mxu0 0.0
    %1597 = vmatpush1.msra.mxu0 0.0
    %1598 = vmatprep.subr.mxu0 0.0
    %1599 = vmatpush1.msra.mxu0 0.0
    %1600 = vmatprep.subr.mxu0 0.0
    %1601 = vmatpush1.msra.mxu0 0.0
    %1602 = vmatprep.subr.mxu0 0.0
    %1603 = vmatpush1.msra.mxu0 0.0
    %1604 = vmatprep.subr.mxu0 0.0
    %1605 = vmatpush1.msra.mxu0 0.0
    %1606 = vmatprep.subr.mxu0 0.0
    %1607 = vmatpush1.msra.mxu0 0.0
    %1608 = vmatprep.subr.mxu0 0.0
    %1609 = vmatpush1.msra.mxu0 0.0
    %1610 = vmatprep.mubr.f32.mxu0 0.0
    %1611 = vmatmul.mubr.f32.gmra.mrb[0].mxu0 %v1544
    %v1612 = vpop.f32.mrb[0].mxu0
    %v1613 = vadd.f32 0.0, %v1612
    %v1614 = vpop.f32.mrb[0].mxu0
    %1615 = vdwg.mxu0
    %v1617 = vrot.slane %v1613, 2
    %v1619 = vadd.f32 %v1217, %v1617
    %v1620 = vxor.u32 %v1619, 2147483648
    %v1621 = vmul.f32 %v1620, 1.442695
    %v1622 = vpow.pop %v1621
    %v1623 = vadd.f32 %v1622, 1.0
    %v1624 = vrcp.pop %v1623
    %v1625 = vmul.f32 1.0, %v1624
    %v1626 = vtanh.pop %v1619
    %v1628 = vrot.slane %v1533, 6
    %v1630 = vmul.f32 %v1625, %v1628
    %1632 = vrot.lane.b32.xlu0 %v1626, 64
    %v1633 = vpop.permute.xlu0 %1632
    %v1635 = vmul.f32 %v1625, %v1633
    %1637 = vrot.lane.b32.xlu0 %v1635, 32
    %v1638 = vpop.permute.xlu0 %1637
    %v1640 = vadd.f32 %v1630, %v1638
    %v1641 = vtanh.pop %v1640
    %1643 = vrot.lane.b32.xlu0 %v1641, 64
    %v1644 = vpop.permute.xlu0 %1643
    %v1646 = vmul.f32 %v1625, %v1644
    %v1648 = vrot.slane %v1646, 6
    %1649 = vrot.lane.b32.xlu0 %v1648, 32
    %v1650 = vpop.permute.xlu0 %1649
    %v1651 = vsel %vm108, %v1650, 0
    %1653 = vmatprep.subr.mxu0 0.0
    %1654 = vmatpush1.msra.mxu0 %v1226
    %1655 = vmatprep.subr.mxu0 0.0
    %1656 = vmatpush1.msra.mxu0 %v1227
    %1657 = vmatprep.subr.mxu0 0.0
    %1658 = vmatpush1.msra.mxu0 %v1228
    %1659 = vmatprep.subr.mxu0 0.0
    %1660 = vmatpush1.msra.mxu0 %v1229
    %1661 = vmatprep.subr.mxu0 0.0
    %1662 = vmatpush1.msra.mxu0 0.0
    %1663 = vmatprep.subr.mxu0 0.0
    %1664 = vmatpush1.msra.mxu0 0.0
    %1665 = vmatprep.subr.mxu0 0.0
    %1666 = vmatpush1.msra.mxu0 0.0
    %1667 = vmatprep.subr.mxu0 0.0
    %1668 = vmatpush1.msra.mxu0 0.0
    %1669 = vmatprep.subr.mxu0 0.0
    %1670 = vmatpush1.msra.mxu0 0.0
    %1671 = vmatprep.subr.mxu0 0.0
    %1672 = vmatpush1.msra.mxu0 0.0
    %1673 = vmatprep.subr.mxu0 0.0
    %1674 = vmatpush1.msra.mxu0 0.0
    %1675 = vmatprep.subr.mxu0 0.0
    %1676 = vmatpush1.msra.mxu0 0.0
    %1677 = vmatprep.subr.mxu0 0.0
    %1678 = vmatpush1.msra.mxu0 0.0
    %1679 = vmatprep.subr.mxu0 0.0
    %1680 = vmatpush1.msra.mxu0 0.0
    %1681 = vmatprep.subr.mxu0 0.0
    %1682 = vmatpush1.msra.mxu0 0.0
    %1683 = vmatprep.subr.mxu0 0.0
    %1684 = vmatpush1.msra.mxu0 0.0
    %1685 = vmatprep.subr.mxu0 0.0
    %1686 = vmatpush1.msra.mxu0 0.0
    %1687 = vmatprep.subr.mxu0 0.0
    %1688 = vmatpush1.msra.mxu0 0.0
    %1689 = vmatprep.subr.mxu0 0.0
    %1690 = vmatpush1.msra.mxu0 0.0
    %1691 = vmatprep.subr.mxu0 0.0
    %1692 = vmatpush1.msra.mxu0 0.0
    %1693 = vmatprep.subr.mxu0 0.0
    %1694 = vmatpush1.msra.mxu0 0.0
    %1695 = vmatprep.subr.mxu0 0.0
    %1696 = vmatpush1.msra.mxu0 0.0
    %1697 = vmatprep.subr.mxu0 0.0
    %1698 = vmatpush1.msra.mxu0 0.0
    %1699 = vmatprep.subr.mxu0 0.0
    %1700 = vmatpush1.msra.mxu0 0.0
    %1701 = vmatprep.subr.mxu0 0.0
    %1702 = vmatpush1.msra.mxu0 0.0
    %1703 = vmatprep.subr.mxu0 0.0
    %1704 = vmatpush1.msra.mxu0 0.0
    %1705 = vmatprep.subr.mxu0 0.0
    %1706 = vmatpush1.msra.mxu0 0.0
    %1707 = vmatprep.subr.mxu0 0.0
    %1708 = vmatpush1.msra.mxu0 0.0
    %1709 = vmatprep.subr.mxu0 0.0
    %1710 = vmatpush1.msra.mxu0 0.0
    %1711 = vmatprep.subr.mxu0 0.0
    %1712 = vmatpush1.msra.mxu0 0.0
    %1713 = vmatprep.subr.mxu0 0.0
    %1714 = vmatpush1.msra.mxu0 0.0
    %1715 = vmatprep.subr.mxu0 0.0
    %1716 = vmatpush1.msra.mxu0 0.0
    %1717 = vmatprep.mubr.f32.mxu0 0.0
    %1718 = vmatmul.mubr.f32.gmra.mrb[0].mxu0 %v1651
    %v1719 = vpop.f32.mrb[0].mxu0
    %v1720 = vadd.f32 0.0, %v1719
    %v1721 = vpop.f32.mrb[0].mxu0
    %1722 = vdwg.mxu0
    %v1723 = vadd.f32 %v1222, %v1720
    %v1724 = vxor.u32 %v1723, 2147483648
    %v1725 = vmul.f32 %v1724, 1.442695
    %v1726 = vpow.pop %v1725
    %v1727 = vadd.f32 %v1726, 1.0
    %v1728 = vrcp.pop %v1727
    %v1729 = vmul.f32 1.0, %v1728
    %v1730 = vtanh.pop %v1723
    %v1732 = vrot.slane %v1640, 6
    %v1734 = vmul.f32 %v1729, %v1732
    %1736 = vrot.lane.b32.xlu0 %v1730, 64
    %v1737 = vpop.permute.xlu0 %1736
    %v1739 = vmul.f32 %v1729, %v1737
    %1741 = vrot.lane.b32.xlu0 %v1739, 32
    %v1742 = vpop.permute.xlu0 %1741
    %v1744 = vadd.f32 %v1734, %v1742
    %v1745 = vtanh.pop %v1744
    %1747 = vrot.lane.b32.xlu0 %v1745, 64
    %v1748 = vpop.permute.xlu0 %1747
    %v1750 = vmul.f32 %v1729, %v1748
    %1752 = vrot.lane.b32.xlu0 %v1750, 32
    %v1753 = vpop.permute.xlu0 %1752
    %v1754 = vsel %vm108, %v1753, 0
    %1756 = vmatprep.subr.mxu0 0.0
    %1757 = vmatpush1.msra.mxu0 %v1226
    %1758 = vmatprep.subr.mxu0 0.0
    %1759 = vmatpush1.msra.mxu0 %v1227
    %1760 = vmatprep.subr.mxu0 0.0
    %1761 = vmatpush1.msra.mxu0 %v1228
    %1762 = vmatprep.subr.mxu0 0.0
    %1763 = vmatpush1.msra.mxu0 %v1229
    %1764 = vmatprep.subr.mxu0 0.0
    %1765 = vmatpush1.msra.mxu0 0.0
    %1766 = vmatprep.subr.mxu0 0.0
    %1767 = vmatpush1.msra.mxu0 0.0
    %1768 = vmatprep.subr.mxu0 0.0
    %1769 = vmatpush1.msra.mxu0 0.0
    %1770 = vmatprep.subr.mxu0 0.0
    %1771 = vmatpush1.msra.mxu0 0.0
    %1772 = vmatprep.subr.mxu0 0.0
    %1773 = vmatpush1.msra.mxu0 0.0
    %1774 = vmatprep.subr.mxu0 0.0
    %1775 = vmatpush1.msra.mxu0 0.0
    %1776 = vmatprep.subr.mxu0 0.0
    %1777 = vmatpush1.msra.mxu0 0.0
    %1778 = vmatprep.subr.mxu0 0.0
    %1779 = vmatpush1.msra.mxu0 0.0
    %1780 = vmatprep.subr.mxu0 0.0
    %1781 = vmatpush1.msra.mxu0 0.0
    %1782 = vmatprep.subr.mxu0 0.0
    %1783 = vmatpush1.msra.mxu0 0.0
    %1784 = vmatprep.subr.mxu0 0.0
    %1785 = vmatpush1.msra.mxu0 0.0
    %1786 = vmatprep.subr.mxu0 0.0
    %1787 = vmatpush1.msra.mxu0 0.0
    %1788 = vmatprep.subr.mxu0 0.0
    %1789 = vmatpush1.msra.mxu0 0.0
    %1790 = vmatprep.subr.mxu0 0.0
    %1791 = vmatpush1.msra.mxu0 0.0
    %1792 = vmatprep.subr.mxu0 0.0
    %1793 = vmatpush1.msra.mxu0 0.0
    %1794 = vmatprep.subr.mxu0 0.0
    %1795 = vmatpush1.msra.mxu0 0.0
    %1796 = vmatprep.subr.mxu0 0.0
    %1797 = vmatpush1.msra.mxu0 0.0
    %1798 = vmatprep.subr.mxu0 0.0
    %1799 = vmatpush1.msra.mxu0 0.0
    %1800 = vmatprep.subr.mxu0 0.0
    %1801 = vmatpush1.msra.mxu0 0.0
    %1802 = vmatprep.subr.mxu0 0.0
    %1803 = vmatpush1.msra.mxu0 0.0
    %1804 = vmatprep.subr.mxu0 0.0
    %1805 = vmatpush1.msra.mxu0 0.0
    %1806 = vmatprep.subr.mxu0 0.0
    %1807 = vmatpush1.msra.mxu0 0.0
    %1808 = vmatprep.subr.mxu0 0.0
    %1809 = vmatpush1.msra.mxu0 0.0
    %1810 = vmatprep.subr.mxu0 0.0
    %1811 = vmatpush1.msra.mxu0 0.0
    %1812 = vmatprep.subr.mxu0 0.0
    %1813 = vmatpush1.msra.mxu0 0.0
    %1814 = vmatprep.subr.mxu0 0.0
    %1815 = vmatpush1.msra.mxu0 0.0
    %1816 = vmatprep.subr.mxu0 0.0
    %1817 = vmatpush1.msra.mxu0 0.0
    %1818 = vmatprep.subr.mxu0 0.0
    %1819 = vmatpush1.msra.mxu0 0.0
    %1820 = vmatprep.mubr.f32.mxu0 0.0
    %1821 = vmatmul.mubr.f32.gmra.mrb[0].mxu0 %v1754
    %v1822 = vpop.f32.mrb[0].mxu0
    %v1823 = vadd.f32 0.0, %v1822
    %v1824 = vpop.f32.mrb[0].mxu0
    %1825 = vdwg.mxu0
    %v1827 = vrot.slane %v1823, 6
    %v1829 = vadd.f32 %v1222, %v1827
    %v1830 = vxor.u32 %v1829, 2147483648
    %v1831 = vmul.f32 %v1830, 1.442695
    %v1832 = vpow.pop %v1831
    %v1833 = vadd.f32 %v1832, 1.0
    %v1834 = vrcp.pop %v1833
    %v1835 = vmul.f32 1.0, %v1834
    %v1836 = vtanh.pop %v1829
    %v1838 = vrot.slane %v1744, 6
    %v1840 = vmul.f32 %v1835, %v1838
    %1842 = vrot.lane.b32.xlu0 %v1836, 64
    %v1843 = vpop.permute.xlu0 %1842
    %v1845 = vmul.f32 %v1835, %v1843
    %1847 = vrot.lane.b32.xlu0 %v1845, 32
    %v1848 = vpop.permute.xlu0 %1847
    %v1850 = vadd.f32 %v1840, %v1848
    %v1851 = vtanh.pop %v1850
    %1853 = vrot.lane.b32.xlu0 %v1851, 64
    %v1854 = vpop.permute.xlu0 %1853
    %v1856 = vmul.f32 %v1835, %v1854
    %v1858 = vrot.slane %v1856, 2
    %1859 = vrot.lane.b32.xlu0 %v1858, 32
    %v1860 = vpop.permute.xlu0 %1859
    %v1861 = vsel %vm108, %v1860, 0
    %1863 = vmatprep.subr.mxu0 0.0
    %1864 = vmatpush1.msra.mxu0 %v1226
    %1865 = vmatprep.subr.mxu0 0.0
    %1866 = vmatpush1.msra.mxu0 %v1227
    %1867 = vmatprep.subr.mxu0 0.0
    %1868 = vmatpush1.msra.mxu0 %v1228
    %1869 = vmatprep.subr.mxu0 0.0
    %1870 = vmatpush1.msra.mxu0 %v1229
    %1871 = vmatprep.subr.mxu0 0.0
    %1872 = vmatpush1.msra.mxu0 0.0
    %1873 = vmatprep.subr.mxu0 0.0
    %1874 = vmatpush1.msra.mxu0 0.0
    %1875 = vmatprep.subr.mxu0 0.0
    %1876 = vmatpush1.msra.mxu0 0.0
    %1877 = vmatprep.subr.mxu0 0.0
    %1878 = vmatpush1.msra.mxu0 0.0
    %1879 = vmatprep.subr.mxu0 0.0
    %1880 = vmatpush1.msra.mxu0 0.0
    %1881 = vmatprep.subr.mxu0 0.0
    %1882 = vmatpush1.msra.mxu0 0.0
    %1883 = vmatprep.subr.mxu0 0.0
    %1884 = vmatpush1.msra.mxu0 0.0
    %1885 = vmatprep.subr.mxu0 0.0
    %1886 = vmatpush1.msra.mxu0 0.0
    %1887 = vmatprep.subr.mxu0 0.0
    %1888 = vmatpush1.msra.mxu0 0.0
    %1889 = vmatprep.subr.mxu0 0.0
    %1890 = vmatpush1.msra.mxu0 0.0
    %1891 = vmatprep.subr.mxu0 0.0
    %1892 = vmatpush1.msra.mxu0 0.0
    %1893 = vmatprep.subr.mxu0 0.0
    %1894 = vmatpush1.msra.mxu0 0.0
    %1895 = vmatprep.subr.mxu0 0.0
    %1896 = vmatpush1.msra.mxu0 0.0
    %1897 = vmatprep.subr.mxu0 0.0
    %1898 = vmatpush1.msra.mxu0 0.0
    %1899 = vmatprep.subr.mxu0 0.0
    %1900 = vmatpush1.msra.mxu0 0.0
    %1901 = vmatprep.subr.mxu0 0.0
    %1902 = vmatpush1.msra.mxu0 0.0
    %1903 = vmatprep.subr.mxu0 0.0
    %1904 = vmatpush1.msra.mxu0 0.0
    %1905 = vmatprep.subr.mxu0 0.0
    %1906 = vmatpush1.msra.mxu0 0.0
    %1907 = vmatprep.subr.mxu0 0.0
    %1908 = vmatpush1.msra.mxu0 0.0
    %1909 = vmatprep.subr.mxu0 0.0
    %1910 = vmatpush1.msra.mxu0 0.0
    %1911 = vmatprep.subr.mxu0 0.0
    %1912 = vmatpush1.msra.mxu0 0.0
    %1913 = vmatprep.subr.mxu0 0.0
    %1914 = vmatpush1.msra.mxu0 0.0
    %1915 = vmatprep.subr.mxu0 0.0
    %1916 = vmatpush1.msra.mxu0 0.0
    %1917 = vmatprep.subr.mxu0 0.0
    %1918 = vmatpush1.msra.mxu0 0.0
    %1919 = vmatprep.subr.mxu0 0.0
    %1920 = vmatpush1.msra.mxu0 0.0
    %1921 = vmatprep.subr.mxu0 0.0
    %1922 = vmatpush1.msra.mxu0 0.0
    %1923 = vmatprep.subr.mxu0 0.0
    %1924 = vmatpush1.msra.mxu0 0.0
    %1925 = vmatprep.subr.mxu0 0.0
    %1926 = vmatpush1.msra.mxu0 0.0
    %1927 = vmatprep.mubr.f32.mxu0 0.0
    %1928 = vmatmul.mubr.f32.gmra.mrb[0].mxu0 %v1861
    %v1929 = vpop.f32.mrb[0].mxu0
    %v1930 = vadd.f32 0.0, %v1929
    %v1931 = vpop.f32.mrb[0].mxu0
    %1932 = vdwg.mxu0
    %v1934 = vrot.slane %v1930, 4
    %v1936 = vadd.f32 %v1222, %v1934
    %v1937 = vxor.u32 %v1936, 2147483648
    %v1938 = vmul.f32 %v1937, 1.442695
    %v1939 = vpow.pop %v1938
    %v1940 = vadd.f32 %v1939, 1.0
    %v1941 = vrcp.pop %v1940
    %v1942 = vmul.f32 1.0, %v1941
    %v1943 = vtanh.pop %v1936
    %v1945 = vrot.slane %v1850, 6
    %v1947 = vmul.f32 %v1942, %v1945
    %1949 = vrot.lane.b32.xlu0 %v1943, 64
    %v1950 = vpop.permute.xlu0 %1949
    %v1952 = vmul.f32 %v1942, %v1950
    %1954 = vrot.lane.b32.xlu0 %v1952, 32
    %v1955 = vpop.permute.xlu0 %1954
    %v1957 = vadd.f32 %v1947, %v1955
    %v1958 = vtanh.pop %v1957
    %1960 = vrot.lane.b32.xlu0 %v1958, 64
    %v1961 = vpop.permute.xlu0 %1960
    %v1963 = vmul.f32 %v1942, %v1961
    %v1965 = vrot.slane %v1963, 4
    %1966 = vrot.lane.b32.xlu0 %v1965, 32
    %v1967 = vpop.permute.xlu0 %1966
    %v1968 = vsel %vm108, %v1967, 0
    %1970 = vmatprep.subr.mxu0 0.0
    %1971 = vmatpush1.msra.mxu0 %v1226
    %1972 = vmatprep.subr.mxu0 0.0
    %1973 = vmatpush1.msra.mxu0 %v1227
    %1974 = vmatprep.subr.mxu0 0.0
    %1975 = vmatpush1.msra.mxu0 %v1228
    %1976 = vmatprep.subr.mxu0 0.0
    %1977 = vmatpush1.msra.mxu0 %v1229
    %1978 = vmatprep.subr.mxu0 0.0
    %1979 = vmatpush1.msra.mxu0 0.0
    %1980 = vmatprep.subr.mxu0 0.0
    %1981 = vmatpush1.msra.mxu0 0.0
    %1982 = vmatprep.subr.mxu0 0.0
    %1983 = vmatpush1.msra.mxu0 0.0
    %1984 = vmatprep.subr.mxu0 0.0
    %1985 = vmatpush1.msra.mxu0 0.0
    %1986 = vmatprep.subr.mxu0 0.0
    %1987 = vmatpush1.msra.mxu0 0.0
    %1988 = vmatprep.subr.mxu0 0.0
    %1989 = vmatpush1.msra.mxu0 0.0
    %1990 = vmatprep.subr.mxu0 0.0
    %1991 = vmatpush1.msra.mxu0 0.0
    %1992 = vmatprep.subr.mxu0 0.0
    %1993 = vmatpush1.msra.mxu0 0.0
    %1994 = vmatprep.subr.mxu0 0.0
    %1995 = vmatpush1.msra.mxu0 0.0
    %1996 = vmatprep.subr.mxu0 0.0
    %1997 = vmatpush1.msra.mxu0 0.0
    %1998 = vmatprep.subr.mxu0 0.0
    %1999 = vmatpush1.msra.mxu0 0.0
    %2000 = vmatprep.subr.mxu0 0.0
    %2001 = vmatpush1.msra.mxu0 0.0
    %2002 = vmatprep.subr.mxu0 0.0
    %2003 = vmatpush1.msra.mxu0 0.0
    %2004 = vmatprep.subr.mxu0 0.0
    %2005 = vmatpush1.msra.mxu0 0.0
    %2006 = vmatprep.subr.mxu0 0.0
    %2007 = vmatpush1.msra.mxu0 0.0
    %2008 = vmatprep.subr.mxu0 0.0
    %2009 = vmatpush1.msra.mxu0 0.0
    %2010 = vmatprep.subr.mxu0 0.0
    %2011 = vmatpush1.msra.mxu0 0.0
    %2012 = vmatprep.subr.mxu0 0.0
    %2013 = vmatpush1.msra.mxu0 0.0
    %2014 = vmatprep.subr.mxu0 0.0
    %2015 = vmatpush1.msra.mxu0 0.0
    %2016 = vmatprep.subr.mxu0 0.0
    %2017 = vmatpush1.msra.mxu0 0.0
    %2018 = vmatprep.subr.mxu0 0.0
    %2019 = vmatpush1.msra.mxu0 0.0
    %2020 = vmatprep.subr.mxu0 0.0
    %2021 = vmatpush1.msra.mxu0 0.0
    %2022 = vmatprep.subr.mxu0 0.0
    %2023 = vmatpush1.msra.mxu0 0.0
    %2024 = vmatprep.subr.mxu0 0.0
    %2025 = vmatpush1.msra.mxu0 0.0
    %2026 = vmatprep.subr.mxu0 0.0
    %2027 = vmatpush1.msra.mxu0 0.0
    %2028 = vmatprep.subr.mxu0 0.0
    %2029 = vmatpush1.msra.mxu0 0.0
    %2030 = vmatprep.subr.mxu0 0.0
    %2031 = vmatpush1.msra.mxu0 0.0
    %2032 = vmatprep.subr.mxu0 0.0
    %2033 = vmatpush1.msra.mxu0 0.0
    %2034 = vmatprep.mubr.f32.mxu0 0.0
    %2035 = vmatmul.mubr.f32.gmra.mrb[0].mxu0 %v1968
    %v2036 = vpop.f32.mrb[0].mxu0
    %v2037 = vadd.f32 0.0, %v2036
    %v2038 = vpop.f32.mrb[0].mxu0
    %2039 = vdwg.mxu0
    %v2041 = vrot.slane %v2037, 2
    %v2043 = vadd.f32 %v1222, %v2041
    %v2044 = vxor.u32 %v2043, 2147483648
    %v2045 = vmul.f32 %v2044, 1.442695
    %v2046 = vpow.pop %v2045
    %v2047 = vadd.f32 %v2046, 1.0
    %v2048 = vrcp.pop %v2047
    %v2049 = vmul.f32 1.0, %v2048
    %v2050 = vtanh.pop %v2043
    %v2052 = vrot.slane %v1957, 6
    %v2054 = vmul.f32 %v2049, %v2052
    %2056 = vrot.lane.b32.xlu0 %v2050, 64
    %v2057 = vpop.permute.xlu0 %2056
    %v2059 = vmul.f32 %v2049, %v2057
    %2061 = vrot.lane.b32.xlu0 %v2059, 32
    %v2062 = vpop.permute.xlu0 %2061
    %v2064 = vadd.f32 %v2054, %v2062
    %v2065 = vtanh.pop %v2064
    %2067 = vrot.lane.b32.xlu0 %v2065, 64
    %v2068 = vpop.permute.xlu0 %2067
    %v2070 = vmul.f32 %v2049, %v2068
    %v2071 = vxor.u32 %v1224, 2147483648
    %v2072 = vmul.f32 %v2071, 1.442695
    %v2073 = vpow.pop %v2072
    %v2074 = vadd.f32 %v2073, 1.0
    %v2075 = vrcp.pop %v2074
    %v2076 = vmul.f32 1.0, %v2075
    %v2077 = vtanh.pop %v1224
    %2079 = vrot.lane.b32.xlu0 %v2077, 64
    %v2080 = vpop.permute.xlu0 %2079
    %v2082 = vmul.f32 %v2076, %v2080
    %v2083 = vtanh.pop %v2082
    %2085 = vrot.lane.b32.xlu0 %v2083, 96
    %v2086 = vpop.permute.xlu0 %2085
    %v2088 = vmul.f32 %v2076, %v2086
    %v2089 = vld [vmem:[%s7] sm:$0xff]
    %v2090 = vld [vmem:[%s7 + $0x8] sm:$0xff]
    %v2091 = vld [vmem:[%s7 + $0x10] sm:$0xff]
    %v2092 = vld [vmem:[%s7 + $0x18] sm:$0xff]
    %v2093 = vld [vmem:[%s7 + $0x20] sm:$0xff]
    %v2094 = vld [vmem:[%s7 + $0x28] sm:$0xff]
    %v2095 = vld [vmem:[%s7 + $0x30] sm:$0xff]
    %v2096 = vld [vmem:[%s7 + $0x38] sm:$0xff]
    %v2098 = vrot.slane %v2088, 6
    %2099 = vrot.lane.b32.xlu0 %v2098, 32
    %v2100 = vpop.permute.xlu0 %2099
    %v2101 = vsel %vm108, %v2100, 0
    %2103 = vmatprep.subr.mxu0 0.0
    %2104 = vmatpush1.msra.mxu0 %v2093
    %2105 = vmatprep.subr.mxu0 0.0
    %2106 = vmatpush1.msra.mxu0 %v2094
    %2107 = vmatprep.subr.mxu0 0.0
    %2108 = vmatpush1.msra.mxu0 %v2095
    %2109 = vmatprep.subr.mxu0 0.0
    %2110 = vmatpush1.msra.mxu0 %v2096
    %2111 = vmatprep.subr.mxu0 0.0
    %2112 = vmatpush1.msra.mxu0 0.0
    %2113 = vmatprep.subr.mxu0 0.0
    %2114 = vmatpush1.msra.mxu0 0.0
    %2115 = vmatprep.subr.mxu0 0.0
    %2116 = vmatpush1.msra.mxu0 0.0
    %2117 = vmatprep.subr.mxu0 0.0
    %2118 = vmatpush1.msra.mxu0 0.0
    %2119 = vmatprep.subr.mxu0 0.0
    %2120 = vmatpush1.msra.mxu0 0.0
    %2121 = vmatprep.subr.mxu0 0.0
    %2122 = vmatpush1.msra.mxu0 0.0
    %2123 = vmatprep.subr.mxu0 0.0
    %2124 = vmatpush1.msra.mxu0 0.0
    %2125 = vmatprep.subr.mxu0 0.0
    %2126 = vmatpush1.msra.mxu0 0.0
    %2127 = vmatprep.subr.mxu0 0.0
    %2128 = vmatpush1.msra.mxu0 0.0
    %2129 = vmatprep.subr.mxu0 0.0
    %2130 = vmatpush1.msra.mxu0 0.0
    %2131 = vmatprep.subr.mxu0 0.0
    %2132 = vmatpush1.msra.mxu0 0.0
    %2133 = vmatprep.subr.mxu0 0.0
    %2134 = vmatpush1.msra.mxu0 0.0
    %2135 = vmatprep.subr.mxu0 0.0
    %2136 = vmatpush1.msra.mxu0 0.0
    %2137 = vmatprep.subr.mxu0 0.0
    %2138 = vmatpush1.msra.mxu0 0.0
    %2139 = vmatprep.subr.mxu0 0.0
    %2140 = vmatpush1.msra.mxu0 0.0
    %2141 = vmatprep.subr.mxu0 0.0
    %2142 = vmatpush1.msra.mxu0 0.0
    %2143 = vmatprep.subr.mxu0 0.0
    %2144 = vmatpush1.msra.mxu0 0.0
    %2145 = vmatprep.subr.mxu0 0.0
    %2146 = vmatpush1.msra.mxu0 0.0
    %2147 = vmatprep.subr.mxu0 0.0
    %2148 = vmatpush1.msra.mxu0 0.0
    %2149 = vmatprep.subr.mxu0 0.0
    %2150 = vmatpush1.msra.mxu0 0.0
    %2151 = vmatprep.subr.mxu0 0.0
    %2152 = vmatpush1.msra.mxu0 0.0
    %2153 = vmatprep.subr.mxu0 0.0
    %2154 = vmatpush1.msra.mxu0 0.0
    %2155 = vmatprep.subr.mxu0 0.0
    %2156 = vmatpush1.msra.mxu0 0.0
    %2157 = vmatprep.subr.mxu0 0.0
    %2158 = vmatpush1.msra.mxu0 0.0
    %2159 = vmatprep.subr.mxu0 0.0
    %2160 = vmatpush1.msra.mxu0 0.0
    %2161 = vmatprep.subr.mxu0 0.0
    %2162 = vmatpush1.msra.mxu0 0.0
    %2163 = vmatprep.subr.mxu0 0.0
    %2164 = vmatpush1.msra.mxu0 0.0
    %2165 = vmatprep.subr.mxu0 0.0
    %2166 = vmatpush1.msra.mxu0 0.0
    %2167 = vmatprep.mubr.f32.mxu0 0.0
    %2168 = vmatmul.mubr.f32.gmra.mrb[0].mxu0 %v2101
    %v2169 = vpop.f32.mrb[0].mxu0
    %v2170 = vadd.f32 0.0, %v2169
    %v2171 = vpop.f32.mrb[0].mxu0
    %2172 = vdwg.mxu0
    %v2174 = vrot.slane %v2070, 6
    %2175 = vrot.lane.b32.xlu0 %v2174, 32
    %v2176 = vpop.permute.xlu0 %2175
    %v2177 = vsel %vm108, %v2176, 0
    %2179 = vmatprep.subr.mxu0 0.0
    %2180 = vmatpush1.msra.mxu0 %v2089
    %2181 = vmatprep.subr.mxu0 0.0
    %2182 = vmatpush1.msra.mxu0 %v2090
    %2183 = vmatprep.subr.mxu0 0.0
    %2184 = vmatpush1.msra.mxu0 %v2091
    %2185 = vmatprep.subr.mxu0 0.0
    %2186 = vmatpush1.msra.mxu0 %v2092
    %2187 = vmatprep.subr.mxu0 0.0
    %2188 = vmatpush1.msra.mxu0 0.0
    %2189 = vmatprep.subr.mxu0 0.0
    %2190 = vmatpush1.msra.mxu0 0.0
    %2191 = vmatprep.subr.mxu0 0.0
    %2192 = vmatpush1.msra.mxu0 0.0
    %2193 = vmatprep.subr.mxu0 0.0
    %2194 = vmatpush1.msra.mxu0 0.0
    %2195 = vmatprep.subr.mxu0 0.0
    %2196 = vmatpush1.msra.mxu0 0.0
    %2197 = vmatprep.subr.mxu0 0.0
    %2198 = vmatpush1.msra.mxu0 0.0
    %2199 = vmatprep.subr.mxu0 0.0
    %2200 = vmatpush1.msra.mxu0 0.0
    %2201 = vmatprep.subr.mxu0 0.0
    %2202 = vmatpush1.msra.mxu0 0.0
    %2203 = vmatprep.subr.mxu0 0.0
    %2204 = vmatpush1.msra.mxu0 0.0
    %2205 = vmatprep.subr.mxu0 0.0
    %2206 = vmatpush1.msra.mxu0 0.0
    %2207 = vmatprep.subr.mxu0 0.0
    %2208 = vmatpush1.msra.mxu0 0.0
    %2209 = vmatprep.subr.mxu0 0.0
    %2210 = vmatpush1.msra.mxu0 0.0
    %2211 = vmatprep.subr.mxu0 0.0
    %2212 = vmatpush1.msra.mxu0 0.0
    %2213 = vmatprep.subr.mxu0 0.0
    %2214 = vmatpush1.msra.mxu0 0.0
    %2215 = vmatprep.subr.mxu0 0.0
    %2216 = vmatpush1.msra.mxu0 0.0
    %2217 = vmatprep.subr.mxu0 0.0
    %2218 = vmatpush1.msra.mxu0 0.0
    %2219 = vmatprep.subr.mxu0 0.0
    %2220 = vmatpush1.msra.mxu0 0.0
    %2221 = vmatprep.subr.mxu0 0.0
    %2222 = vmatpush1.msra.mxu0 0.0
    %2223 = vmatprep.subr.mxu0 0.0
    %2224 = vmatpush1.msra.mxu0 0.0
    %2225 = vmatprep.subr.mxu0 0.0
    %2226 = vmatpush1.msra.mxu0 0.0
    %2227 = vmatprep.subr.mxu0 0.0
    %2228 = vmatpush1.msra.mxu0 0.0
    %2229 = vmatprep.subr.mxu0 0.0
    %2230 = vmatpush1.msra.mxu0 0.0
    %2231 = vmatprep.subr.mxu0 0.0
    %2232 = vmatpush1.msra.mxu0 0.0
    %2233 = vmatprep.subr.mxu0 0.0
    %2234 = vmatpush1.msra.mxu0 0.0
    %2235 = vmatprep.subr.mxu0 0.0
    %2236 = vmatpush1.msra.mxu0 0.0
    %2237 = vmatprep.subr.mxu0 0.0
    %2238 = vmatpush1.msra.mxu0 0.0
    %2239 = vmatprep.subr.mxu0 0.0
    %2240 = vmatpush1.msra.mxu0 0.0
    %2241 = vmatprep.subr.mxu0 0.0
    %2242 = vmatpush1.msra.mxu0 0.0
    %2243 = vmatprep.mubr.f32.mxu0 0.0
    %2244 = vmatmul.mubr.f32.gmra.mrb[0].mxu0 %v2177
    %v2245 = vpop.f32.mrb[0].mxu0
    %v2246 = vadd.f32 %v2170, %v2245
    %v2247 = vpop.f32.mrb[0].mxu0
    %2248 = vdwg.mxu0
    %v2249 = vld [vmem:[%s8] sm:$0x1]
    %v2251 = vlaneseq
    %v2252 = vshrl.u32 %v2251, 7
    %v2253 = vsub.s32 0, %v2252
    %v2254 = vrot.slane %v2249, %v2253
    %v2256 = vadd.f32 %v2246, %v2254
    %vm2257 = vcmask 74752
    %2258 = vst.msk [vmem:[#allocation11] sm:$0x3] %vm2257, %v2256
    // Predicated region
    $region54: #{tpu_custom_call.1} parent=1 // pred_check
      _
    $region55: #{tpu_custom_call.1} parent=1 // pred_check_branch
      %2260 = sbr.rel (0) target = $region57
    $region56: #{tpu_custom_call.1} parent=1 // pred_region
      %s2262 = ssub.s32 32, 32
      %2263 = vsyncadd [#allocation5], %s2262
      %s2265 = sshll.u32 [#allocation11], 4
      %s2266 = int_to_ptr.vmem [resolvable:$true] %s2265
      %2268 = dma.vmem_to_hbm [thread:$0]  %s2266, 32, %s9, [#allocation5]
    $region57: #{tpu_custom_call.1} parent=1 // pred_fallthru
      _
    // Predicated region
    $region58: #{tpu_custom_call.1} parent=1 // pred_check
      _
    $region59: #{tpu_custom_call.1} parent=1 // pred_check_branch
      %2270 = sbr.rel (0) target = $region61
    $region60: #{tpu_custom_call.1} parent=1 // pred_region
      %2271 = dma.done [#allocation5], 32
    $region61: #{tpu_custom_call.1} parent=1 // pred_fallthru
      _
    %2272 = vsyncpa [#allocation4], 1
    %2273 = vsyncpa [#allocation7], 1
    %2274 = vsyncpa [#allocation10], 1
    %2275 = vsyncpa [#allocation5], 1

</llo_original>
